<compile_context>
chip_gen: v7x
topology: tpu7x:2x2x1
jax: 0.10.0
libtpu: 0.0.40
codegen_flags: <defaults>
</compile_context>

<pallas_src>
import functools

import jax
import jax.numpy as jnp
from jax import lax
from jax.experimental import pallas as pl
from jax.experimental.pallas import tpu as pltpu

EPS = 1e-5


def _bn_relu_kernel(x_ref, gb_ref, o_ref, *, chunk_c):
    """Fused training-mode BatchNorm + ReLU.

    Layout: channels on sublanes, flattened N*H*W on lanes.
      x_ref : (C, L) float32
      gb_ref: (C, 2) float32   column 0 = gamma, column 1 = beta
      o_ref : (C, L) float32
    Processed in `chunk_c`-channel chunks so the full x tile is never live in
    vregs across the stats + normalize passes (prevents spills).
    """
    C, L = x_ref.shape
    inv_l = 1.0 / L
    n_chunks = C // chunk_c

    def body(i, carry):
        r0 = pl.multiple_of(i * chunk_c, chunk_c)
        rows = pl.ds(r0, chunk_c)
        x = x_ref[rows, :]                                      # (chunk_c, L)
        mean = jnp.sum(x, axis=1, keepdims=True) * inv_l        # (chunk_c, 1)
        xc = x - mean
        # Centered variance (biased, matching PyTorch training-mode norm).
        var = jnp.sum(xc * xc, axis=1, keepdims=True) * inv_l
        inv_std = lax.rsqrt(var + EPS)                          # EUP, per channel
        g = gb_ref[rows, 0:1]                                   # (chunk_c, 1)
        b = gb_ref[rows, 1:2]                                   # (chunk_c, 1)
        # y = (x - mean) * gamma * inv_std + beta, then ReLU.
        o_ref[rows, :] = jnp.maximum(xc * (g * inv_std) + b, 0.0)
        return carry

    lax.fori_loop(0, n_chunks, body, 0, unroll=True)


def batchnorm_relu(x_nchw, gamma, beta):
    """x_nchw: (N, C, H, W) float32; gamma, beta: (C,) float32 -> (N, C, H, W)."""
    N, C, H, W = x_nchw.shape

    if N == 1:
        # Free reshape: no data movement, channels already outermost.
        x2d = x_nchw.reshape(C, H * W)
    else:
        # TODO(synk): N>1 pays one transpose each way to keep channel-major rows.
        x2d = jnp.transpose(x_nchw, (1, 0, 2, 3)).reshape(C, N * H * W)
    L = x2d.shape[1]

    # Merge gamma/beta into one (C, 2) slab -> a single tiny input DMA.
    gb = jnp.stack([gamma, beta], axis=1)

    chunk_c = 32
    while chunk_c > 1 and C % chunk_c:
        chunk_c //= 2

    cost = pl.CostEstimate(
        flops=8 * C * L,
        transcendentals=C,
        bytes_accessed=(2 * C * L + 2 * C) * 4,
    )

    out2d = pl.pallas_call(
        functools.partial(_bn_relu_kernel, chunk_c=chunk_c),
        out_shape=jax.ShapeDtypeStruct((C, L), jnp.float32),
        grid=(1,),
        in_specs=[
            pl.BlockSpec((C, L), lambda i: (0, 0)),
            pl.BlockSpec((C, 2), lambda i: (0, 0)),
        ],
        out_specs=pl.BlockSpec((C, L), lambda i: (0, 0)),
        compiler_params=pltpu.CompilerParams(
            dimension_semantics=("arbitrary",),
        ),
        cost_estimate=cost,
    )(x2d, gb)

    if N == 1:
        return out2d.reshape(N, C, H, W)        # free reshape back to NCHW
    return out2d.reshape(C, N, H, W).transpose(1, 0, 2, 3)


def reference(x_nchw, gamma, beta):
    mean = jnp.mean(x_nchw, axis=(0, 2, 3), keepdims=True)
    var = jnp.mean((x_nchw - mean) ** 2, axis=(0, 2, 3), keepdims=True)
    y = (x_nchw - mean) / jnp.sqrt(var + EPS)
    y = y * gamma[None, :, None, None] + beta[None, :, None, None]
    return jnp.maximum(y, 0.0)


if __name__ == "__main__":
    # Shapes implied by the module: BatchNorm2d(256) on a (1, 256, 14, 14) input.
    N, C, H, W = 1, 256, 14, 14
    key = jax.random.PRNGKey(0)
    kx, kg, kb = jax.random.split(key, 3)

    x = jax.random.normal(kx, (N, C, H, W), dtype=jnp.float32)
    # PyTorch default affine params are ones/zeros; random values exercise the path.
    gamma = 1.0 + 0.1 * jax.random.normal(kg, (C,), dtype=jnp.float32)
    beta = 0.1 * jax.random.normal(kb, (C,), dtype=jnp.float32)

    # TODO(synk): running_mean / running_var momentum updates (training-mode
    # buffer side effect) are not modeled; they do not affect the forward output.

    out = batchnorm_relu(x, gamma, beta)
    out = jax.block_until_ready(out)

    ref = reference(x, gamma, beta)
    assert out.shape == (N, C, H, W)
    assert jnp.allclose(out, ref, atol=3e-5, rtol=1e-5), float(
        jnp.max(jnp.abs(out - ref))
    )
    print("KERNEL_OK")
</pallas_src>

<mosaic_0001>
module attributes {stable_mosaic.version = 11 : i64} {
  func.func @_bn_relu_kernel(%arg0: i32, %arg1: memref<256x196xf32, #tpu.memory_space<vmem>>, %arg2: memref<256x2xf32, #tpu.memory_space<vmem>>, %arg3: memref<256x196xf32, #tpu.memory_space<vmem>>) attributes {dimension_semantics = [#tpu.dimension_semantics<arbitrary>], iteration_bounds = array<i64: 1>, scalar_prefetch = 0 : i64, scratch_operands = 0 : i64, tpu.core_type = #tpu.core_type<tc>, window_params = [{pipeline_mode = #tpu.pipeline_mode<synchronous>, transform_indices = @transform_0, window_bounds = array<i64: 256, 196>}, {pipeline_mode = #tpu.pipeline_mode<synchronous>, transform_indices = @transform_1, window_bounds = array<i64: 256, 2>}, {pipeline_mode = #tpu.pipeline_mode<synchronous>, transform_indices = @transform_2, window_bounds = array<i64: 256, 196>}]} {
    %c0_i32 = arith.constant 0 : i32
    %c32_i32 = arith.constant 32 : i32
    %0 = arith.muli %c0_i32, %c32_i32 : i32
    %1 = tpu.assume_multiple %0, 32 : i32
    %2 = arith.index_cast %1 : i32 to index
    %c0 = arith.constant 0 : index
    %3 = vector.load %arg1[%2, %c0] : memref<256x196xf32, #tpu.memory_space<vmem>>, vector<32x196xf32>
    %cst = arith.constant dense<0.000000e+00> : vector<32xf32>
    %4 = vector.multi_reduction <add>, %3, %cst [1] : vector<32x196xf32> to vector<32xf32>
    %5 = vector.shape_cast %4 : vector<32xf32> to vector<32x1xf32>
    %cst_0 = arith.constant 0.00510204071 : f32
    %6 = vector.broadcast %cst_0 : f32 to vector<32x1xf32>
    %7 = arith.mulf %5, %6 : vector<32x1xf32>
    %8 = vector.broadcast %7 : vector<32x1xf32> to vector<32x196xf32>
    %9 = arith.subf %3, %8 : vector<32x196xf32>
    %10 = arith.mulf %9, %9 : vector<32x196xf32>
    %cst_1 = arith.constant dense<0.000000e+00> : vector<32xf32>
    %11 = vector.multi_reduction <add>, %10, %cst_1 [1] : vector<32x196xf32> to vector<32xf32>
    %12 = vector.shape_cast %11 : vector<32xf32> to vector<32x1xf32>
    %cst_2 = arith.constant 0.00510204071 : f32
    %13 = vector.broadcast %cst_2 : f32 to vector<32x1xf32>
    %14 = arith.mulf %12, %13 : vector<32x1xf32>
    %cst_3 = arith.constant 9.99999974E-6 : f32
    %15 = vector.broadcast %cst_3 : f32 to vector<32x1xf32>
    %16 = arith.addf %14, %15 : vector<32x1xf32>
    %17 = math.rsqrt %16 : vector<32x1xf32>
    %18 = arith.index_cast %1 : i32 to index
    %c0_4 = arith.constant 0 : index
    %19 = vector.load %arg2[%18, %c0_4] : memref<256x2xf32, #tpu.memory_space<vmem>>, vector<32x1xf32>
    %20 = arith.index_cast %1 : i32 to index
    %c1 = arith.constant 1 : index
    %21 = vector.load %arg2[%20, %c1] : memref<256x2xf32, #tpu.memory_space<vmem>>, vector<32x1xf32>
    %22 = arith.mulf %19, %17 : vector<32x1xf32>
    %23 = vector.broadcast %22 : vector<32x1xf32> to vector<32x196xf32>
    %24 = arith.mulf %9, %23 : vector<32x196xf32>
    %25 = vector.broadcast %21 : vector<32x1xf32> to vector<32x196xf32>
    %26 = arith.addf %24, %25 : vector<32x196xf32>
    %cst_5 = arith.constant 0.000000e+00 : f32
    %27 = vector.broadcast %cst_5 : f32 to vector<32x196xf32>
    %28 = arith.maximumf %26, %27 : vector<32x196xf32>
    %29 = arith.index_cast %1 : i32 to index
    %c0_6 = arith.constant 0 : index
    %30 = vector.load %arg3[%29, %c0_6] : memref<256x196xf32, #tpu.memory_space<vmem>>, vector<32x196xf32>
    tpu.vector_store %arg3[%29, %c0_6], %28 {strides = array<i32>} : memref<256x196xf32, #tpu.memory_space<vmem>>, vector<32x196xf32>,
    %c1_i32 = arith.constant 1 : i32
    %c32_i32_7 = arith.constant 32 : i32
    %31 = arith.muli %c1_i32, %c32_i32_7 : i32
    %32 = tpu.assume_multiple %31, 32 : i32
    %33 = arith.index_cast %32 : i32 to index
    %c0_8 = arith.constant 0 : index
    %34 = vector.load %arg1[%33, %c0_8] : memref<256x196xf32, #tpu.memory_space<vmem>>, vector<32x196xf32>
    %cst_9 = arith.constant dense<0.000000e+00> : vector<32xf32>
    %35 = vector.multi_reduction <add>, %34, %cst_9 [1] : vector<32x196xf32> to vector<32xf32>
    %36 = vector.shape_cast %35 : vector<32xf32> to vector<32x1xf32>
    %cst_10 = arith.constant 0.00510204071 : f32
    %37 = vector.broadcast %cst_10 : f32 to vector<32x1xf32>
    %38 = arith.mulf %36, %37 : vector<32x1xf32>
    %39 = vector.broadcast %38 : vector<32x1xf32> to vector<32x196xf32>
    %40 = arith.subf %34, %39 : vector<32x196xf32>
    %41 = arith.mulf %40, %40 : vector<32x196xf32>
    %cst_11 = arith.constant dense<0.000000e+00> : vector<32xf32>
    %42 = vector.multi_reduction <add>, %41, %cst_11 [1] : vector<32x196xf32> to vector<32xf32>
    %43 = vector.shape_cast %42 : vector<32xf32> to vector<32x1xf32>
    %cst_12 = arith.constant 0.00510204071 : f32
    %44 = vector.broadcast %cst_12 : f32 to vector<32x1xf32>
    %45 = arith.mulf %43, %44 : vector<32x1xf32>
    %cst_13 = arith.constant 9.99999974E-6 : f32
    %46 = vector.broadcast %cst_13 : f32 to vector<32x1xf32>
    %47 = arith.addf %45, %46 : vector<32x1xf32>
    %48 = math.rsqrt %47 : vector<32x1xf32>
    %49 = arith.index_cast %32 : i32 to index
    %c0_14 = arith.constant 0 : index
    %50 = vector.load %arg2[%49, %c0_14] : memref<256x2xf32, #tpu.memory_space<vmem>>, vector<32x1xf32>
    %51 = arith.index_cast %32 : i32 to index
    %c1_15 = arith.constant 1 : index
    %52 = vector.load %arg2[%51, %c1_15] : memref<256x2xf32, #tpu.memory_space<vmem>>, vector<32x1xf32>
    %53 = arith.mulf %50, %48 : vector<32x1xf32>
    %54 = vector.broadcast %53 : vector<32x1xf32> to vector<32x196xf32>
    %55 = arith.mulf %40, %54 : vector<32x196xf32>
    %56 = vector.broadcast %52 : vector<32x1xf32> to vector<32x196xf32>
    %57 = arith.addf %55, %56 : vector<32x196xf32>
    %cst_16 = arith.constant 0.000000e+00 : f32
    %58 = vector.broadcast %cst_16 : f32 to vector<32x196xf32>
    %59 = arith.maximumf %57, %58 : vector<32x196xf32>
    %60 = arith.index_cast %32 : i32 to index
    %c0_17 = arith.constant 0 : index
    %61 = vector.load %arg3[%60, %c0_17] : memref<256x196xf32, #tpu.memory_space<vmem>>, vector<32x196xf32>
    tpu.vector_store %arg3[%60, %c0_17], %59 {strides = array<i32>} : memref<256x196xf32, #tpu.memory_space<vmem>>, vector<32x196xf32>,
    %c2_i32 = arith.constant 2 : i32
    %c32_i32_18 = arith.constant 32 : i32
    %62 = arith.muli %c2_i32, %c32_i32_18 : i32
    %63 = tpu.assume_multiple %62, 32 : i32
    %64 = arith.index_cast %63 : i32 to index
    %c0_19 = arith.constant 0 : index
    %65 = vector.load %arg1[%64, %c0_19] : memref<256x196xf32, #tpu.memory_space<vmem>>, vector<32x196xf32>
    %cst_20 = arith.constant dense<0.000000e+00> : vector<32xf32>
    %66 = vector.multi_reduction <add>, %65, %cst_20 [1] : vector<32x196xf32> to vector<32xf32>
    %67 = vector.shape_cast %66 : vector<32xf32> to vector<32x1xf32>
    %cst_21 = arith.constant 0.00510204071 : f32
    %68 = vector.broadcast %cst_21 : f32 to vector<32x1xf32>
    %69 = arith.mulf %67, %68 : vector<32x1xf32>
    %70 = vector.broadcast %69 : vector<32x1xf32> to vector<32x196xf32>
    %71 = arith.subf %65, %70 : vector<32x196xf32>
    %72 = arith.mulf %71, %71 : vector<32x196xf32>
    %cst_22 = arith.constant dense<0.000000e+00> : vector<32xf32>
    %73 = vector.multi_reduction <add>, %72, %cst_22 [1] : vector<32x196xf32> to vector<32xf32>
    %74 = vector.shape_cast %73 : vector<32xf32> to vector<32x1xf32>
    %cst_23 = arith.constant 0.00510204071 : f32
    %75 = vector.broadcast %cst_23 : f32 to vector<32x1xf32>
    %76 = arith.mulf %74, %75 : vector<32x1xf32>
    %cst_24 = arith.constant 9.99999974E-6 : f32
    %77 = vector.broadcast %cst_24 : f32 to vector<32x1xf32>
    %78 = arith.addf %76, %77 : vector<32x1xf32>
    %79 = math.rsqrt %78 : vector<32x1xf32>
    %80 = arith.index_cast %63 : i32 to index
    %c0_25 = arith.constant 0 : index
    %81 = vector.load %arg2[%80, %c0_25] : memref<256x2xf32, #tpu.memory_space<vmem>>, vector<32x1xf32>
    %82 = arith.index_cast %63 : i32 to index
    %c1_26 = arith.constant 1 : index
    %83 = vector.load %arg2[%82, %c1_26] : memref<256x2xf32, #tpu.memory_space<vmem>>, vector<32x1xf32>
    %84 = arith.mulf %81, %79 : vector<32x1xf32>
    %85 = vector.broadcast %84 : vector<32x1xf32> to vector<32x196xf32>
    %86 = arith.mulf %71, %85 : vector<32x196xf32>
    %87 = vector.broadcast %83 : vector<32x1xf32> to vector<32x196xf32>
    %88 = arith.addf %86, %87 : vector<32x196xf32>
    %cst_27 = arith.constant 0.000000e+00 : f32
    %89 = vector.broadcast %cst_27 : f32 to vector<32x196xf32>
    %90 = arith.maximumf %88, %89 : vector<32x196xf32>
    %91 = arith.index_cast %63 : i32 to index
    %c0_28 = arith.constant 0 : index
    %92 = vector.load %arg3[%91, %c0_28] : memref<256x196xf32, #tpu.memory_space<vmem>>, vector<32x196xf32>
    tpu.vector_store %arg3[%91, %c0_28], %90 {strides = array<i32>} : memref<256x196xf32, #tpu.memory_space<vmem>>, vector<32x196xf32>,
    %c3_i32 = arith.constant 3 : i32
    %c32_i32_29 = arith.constant 32 : i32
    %93 = arith.muli %c3_i32, %c32_i32_29 : i32
    %94 = tpu.assume_multiple %93, 32 : i32
    %95 = arith.index_cast %94 : i32 to index
    %c0_30 = arith.constant 0 : index
    %96 = vector.load %arg1[%95, %c0_30] : memref<256x196xf32, #tpu.memory_space<vmem>>, vector<32x196xf32>
    %cst_31 = arith.constant dense<0.000000e+00> : vector<32xf32>
    %97 = vector.multi_reduction <add>, %96, %cst_31 [1] : vector<32x196xf32> to vector<32xf32>
    %98 = vector.shape_cast %97 : vector<32xf32> to vector<32x1xf32>
    %cst_32 = arith.constant 0.00510204071 : f32
    %99 = vector.broadcast %cst_32 : f32 to vector<32x1xf32>
    %100 = arith.mulf %98, %99 : vector<32x1xf32>
    %101 = vector.broadcast %100 : vector<32x1xf32> to vector<32x196xf32>
    %102 = arith.subf %96, %101 : vector<32x196xf32>
    %103 = arith.mulf %102, %102 : vector<32x196xf32>
    %cst_33 = arith.constant dense<0.000000e+00> : vector<32xf32>
    %104 = vector.multi_reduction <add>, %103, %cst_33 [1] : vector<32x196xf32> to vector<32xf32>
    %105 = vector.shape_cast %104 : vector<32xf32> to vector<32x1xf32>
    %cst_34 = arith.constant 0.00510204071 : f32
    %106 = vector.broadcast %cst_34 : f32 to vector<32x1xf32>
    %107 = arith.mulf %105, %106 : vector<32x1xf32>
    %cst_35 = arith.constant 9.99999974E-6 : f32
    %108 = vector.broadcast %cst_35 : f32 to vector<32x1xf32>
    %109 = arith.addf %107, %108 : vector<32x1xf32>
    %110 = math.rsqrt %109 : vector<32x1xf32>
    %111 = arith.index_cast %94 : i32 to index
    %c0_36 = arith.constant 0 : index
    %112 = vector.load %arg2[%111, %c0_36] : memref<256x2xf32, #tpu.memory_space<vmem>>, vector<32x1xf32>
    %113 = arith.index_cast %94 : i32 to index
    %c1_37 = arith.constant 1 : index
    %114 = vector.load %arg2[%113, %c1_37] : memref<256x2xf32, #tpu.memory_space<vmem>>, vector<32x1xf32>
    %115 = arith.mulf %112, %110 : vector<32x1xf32>
    %116 = vector.broadcast %115 : vector<32x1xf32> to vector<32x196xf32>
    %117 = arith.mulf %102, %116 : vector<32x196xf32>
    %118 = vector.broadcast %114 : vector<32x1xf32> to vector<32x196xf32>
    %119 = arith.addf %117, %118 : vector<32x196xf32>
    %cst_38 = arith.constant 0.000000e+00 : f32
    %120 = vector.broadcast %cst_38 : f32 to vector<32x196xf32>
    %121 = arith.maximumf %119, %120 : vector<32x196xf32>
    %122 = arith.index_cast %94 : i32 to index
    %c0_39 = arith.constant 0 : index
    %123 = vector.load %arg3[%122, %c0_39] : memref<256x196xf32, #tpu.memory_space<vmem>>, vector<32x196xf32>
    tpu.vector_store %arg3[%122, %c0_39], %121 {strides = array<i32>} : memref<256x196xf32, #tpu.memory_space<vmem>>, vector<32x196xf32>,
    %c4_i32 = arith.constant 4 : i32
    %c32_i32_40 = arith.constant 32 : i32
    %124 = arith.muli %c4_i32, %c32_i32_40 : i32
    %125 = tpu.assume_multiple %124, 32 : i32
    %126 = arith.index_cast %125 : i32 to index
    %c0_41 = arith.constant 0 : index
    %127 = vector.load %arg1[%126, %c0_41] : memref<256x196xf32, #tpu.memory_space<vmem>>, vector<32x196xf32>
    %cst_42 = arith.constant dense<0.000000e+00> : vector<32xf32>
    %128 = vector.multi_reduction <add>, %127, %cst_42 [1] : vector<32x196xf32> to vector<32xf32>
    %129 = vector.shape_cast %128 : vector<32xf32> to vector<32x1xf32>
    %cst_43 = arith.constant 0.00510204071 : f32
    %130 = vector.broadcast %cst_43 : f32 to vector<32x1xf32>
    %131 = arith.mulf %129, %130 : vector<32x1xf32>
    %132 = vector.broadcast %131 : vector<32x1xf32> to vector<32x196xf32>
    %133 = arith.subf %127, %132 : vector<32x196xf32>
    %134 = arith.mulf %133, %133 : vector<32x196xf32>
    %cst_44 = arith.constant dense<0.000000e+00> : vector<32xf32>
    %135 = vector.multi_reduction <add>, %134, %cst_44 [1] : vector<32x196xf32> to vector<32xf32>
    %136 = vector.shape_cast %135 : vector<32xf32> to vector<32x1xf32>
    %cst_45 = arith.constant 0.00510204071 : f32
    %137 = vector.broadcast %cst_45 : f32 to vector<32x1xf32>
    %138 = arith.mulf %136, %137 : vector<32x1xf32>
    %cst_46 = arith.constant 9.99999974E-6 : f32
    %139 = vector.broadcast %cst_46 : f32 to vector<32x1xf32>
    %140 = arith.addf %138, %139 : vector<32x1xf32>
    %141 = math.rsqrt %140 : vector<32x1xf32>
    %142 = arith.index_cast %125 : i32 to index
    %c0_47 = arith.constant 0 : index
    %143 = vector.load %arg2[%142, %c0_47] : memref<256x2xf32, #tpu.memory_space<vmem>>, vector<32x1xf32>
    %144 = arith.index_cast %125 : i32 to index
    %c1_48 = arith.constant 1 : index
    %145 = vector.load %arg2[%144, %c1_48] : memref<256x2xf32, #tpu.memory_space<vmem>>, vector<32x1xf32>
    %146 = arith.mulf %143, %141 : vector<32x1xf32>
    %147 = vector.broadcast %146 : vector<32x1xf32> to vector<32x196xf32>
    %148 = arith.mulf %133, %147 : vector<32x196xf32>
    %149 = vector.broadcast %145 : vector<32x1xf32> to vector<32x196xf32>
    %150 = arith.addf %148, %149 : vector<32x196xf32>
    %cst_49 = arith.constant 0.000000e+00 : f32
    %151 = vector.broadcast %cst_49 : f32 to vector<32x196xf32>
    %152 = arith.maximumf %150, %151 : vector<32x196xf32>
    %153 = arith.index_cast %125 : i32 to index
    %c0_50 = arith.constant 0 : index
    %154 = vector.load %arg3[%153, %c0_50] : memref<256x196xf32, #tpu.memory_space<vmem>>, vector<32x196xf32>
    tpu.vector_store %arg3[%153, %c0_50], %152 {strides = array<i32>} : memref<256x196xf32, #tpu.memory_space<vmem>>, vector<32x196xf32>,
    %c5_i32 = arith.constant 5 : i32
    %c32_i32_51 = arith.constant 32 : i32
    %155 = arith.muli %c5_i32, %c32_i32_51 : i32
    %156 = tpu.assume_multiple %155, 32 : i32
    %157 = arith.index_cast %156 : i32 to index
    %c0_52 = arith.constant 0 : index
    %158 = vector.load %arg1[%157, %c0_52] : memref<256x196xf32, #tpu.memory_space<vmem>>, vector<32x196xf32>
    %cst_53 = arith.constant dense<0.000000e+00> : vector<32xf32>
    %159 = vector.multi_reduction <add>, %158, %cst_53 [1] : vector<32x196xf32> to vector<32xf32>
    %160 = vector.shape_cast %159 : vector<32xf32> to vector<32x1xf32>
    %cst_54 = arith.constant 0.00510204071 : f32
    %161 = vector.broadcast %cst_54 : f32 to vector<32x1xf32>
    %162 = arith.mulf %160, %161 : vector<32x1xf32>
    %163 = vector.broadcast %162 : vector<32x1xf32> to vector<32x196xf32>
    %164 = arith.subf %158, %163 : vector<32x196xf32>
    %165 = arith.mulf %164, %164 : vector<32x196xf32>
    %cst_55 = arith.constant dense<0.000000e+00> : vector<32xf32>
    %166 = vector.multi_reduction <add>, %165, %cst_55 [1] : vector<32x196xf32> to vector<32xf32>
    %167 = vector.shape_cast %166 : vector<32xf32> to vector<32x1xf32>
    %cst_56 = arith.constant 0.00510204071 : f32
    %168 = vector.broadcast %cst_56 : f32 to vector<32x1xf32>
    %169 = arith.mulf %167, %168 : vector<32x1xf32>
    %cst_57 = arith.constant 9.99999974E-6 : f32
    %170 = vector.broadcast %cst_57 : f32 to vector<32x1xf32>
    %171 = arith.addf %169, %170 : vector<32x1xf32>
    %172 = math.rsqrt %171 : vector<32x1xf32>
    %173 = arith.index_cast %156 : i32 to index
    %c0_58 = arith.constant 0 : index
    %174 = vector.load %arg2[%173, %c0_58] : memref<256x2xf32, #tpu.memory_space<vmem>>, vector<32x1xf32>
    %175 = arith.index_cast %156 : i32 to index
    %c1_59 = arith.constant 1 : index
    %176 = vector.load %arg2[%175, %c1_59] : memref<256x2xf32, #tpu.memory_space<vmem>>, vector<32x1xf32>
    %177 = arith.mulf %174, %172 : vector<32x1xf32>
    %178 = vector.broadcast %177 : vector<32x1xf32> to vector<32x196xf32>
    %179 = arith.mulf %164, %178 : vector<32x196xf32>
    %180 = vector.broadcast %176 : vector<32x1xf32> to vector<32x196xf32>
    %181 = arith.addf %179, %180 : vector<32x196xf32>
    %cst_60 = arith.constant 0.000000e+00 : f32
    %182 = vector.broadcast %cst_60 : f32 to vector<32x196xf32>
    %183 = arith.maximumf %181, %182 : vector<32x196xf32>
    %184 = arith.index_cast %156 : i32 to index
    %c0_61 = arith.constant 0 : index
    %185 = vector.load %arg3[%184, %c0_61] : memref<256x196xf32, #tpu.memory_space<vmem>>, vector<32x196xf32>
    tpu.vector_store %arg3[%184, %c0_61], %183 {strides = array<i32>} : memref<256x196xf32, #tpu.memory_space<vmem>>, vector<32x196xf32>,
    %c6_i32 = arith.constant 6 : i32
    %c32_i32_62 = arith.constant 32 : i32
    %186 = arith.muli %c6_i32, %c32_i32_62 : i32
    %187 = tpu.assume_multiple %186, 32 : i32
    %188 = arith.index_cast %187 : i32 to index
    %c0_63 = arith.constant 0 : index
    %189 = vector.load %arg1[%188, %c0_63] : memref<256x196xf32, #tpu.memory_space<vmem>>, vector<32x196xf32>
    %cst_64 = arith.constant dense<0.000000e+00> : vector<32xf32>
    %190 = vector.multi_reduction <add>, %189, %cst_64 [1] : vector<32x196xf32> to vector<32xf32>
    %191 = vector.shape_cast %190 : vector<32xf32> to vector<32x1xf32>
    %cst_65 = arith.constant 0.00510204071 : f32
    %192 = vector.broadcast %cst_65 : f32 to vector<32x1xf32>
    %193 = arith.mulf %191, %192 : vector<32x1xf32>
    %194 = vector.broadcast %193 : vector<32x1xf32> to vector<32x196xf32>
    %195 = arith.subf %189, %194 : vector<32x196xf32>
    %196 = arith.mulf %195, %195 : vector<32x196xf32>
    %cst_66 = arith.constant dense<0.000000e+00> : vector<32xf32>
    %197 = vector.multi_reduction <add>, %196, %cst_66 [1] : vector<32x196xf32> to vector<32xf32>
    %198 = vector.shape_cast %197 : vector<32xf32> to vector<32x1xf32>
    %cst_67 = arith.constant 0.00510204071 : f32
    %199 = vector.broadcast %cst_67 : f32 to vector<32x1xf32>
    %200 = arith.mulf %198, %199 : vector<32x1xf32>
    %cst_68 = arith.constant 9.99999974E-6 : f32
    %201 = vector.broadcast %cst_68 : f32 to vector<32x1xf32>
    %202 = arith.addf %200, %201 : vector<32x1xf32>
    %203 = math.rsqrt %202 : vector<32x1xf32>
    %204 = arith.index_cast %187 : i32 to index
    %c0_69 = arith.constant 0 : index
    %205 = vector.load %arg2[%204, %c0_69] : memref<256x2xf32, #tpu.memory_space<vmem>>, vector<32x1xf32>
    %206 = arith.index_cast %187 : i32 to index
    %c1_70 = arith.constant 1 : index
    %207 = vector.load %arg2[%206, %c1_70] : memref<256x2xf32, #tpu.memory_space<vmem>>, vector<32x1xf32>
    %208 = arith.mulf %205, %203 : vector<32x1xf32>
    %209 = vector.broadcast %208 : vector<32x1xf32> to vector<32x196xf32>
    %210 = arith.mulf %195, %209 : vector<32x196xf32>
    %211 = vector.broadcast %207 : vector<32x1xf32> to vector<32x196xf32>
    %212 = arith.addf %210, %211 : vector<32x196xf32>
    %cst_71 = arith.constant 0.000000e+00 : f32
    %213 = vector.broadcast %cst_71 : f32 to vector<32x196xf32>
    %214 = arith.maximumf %212, %213 : vector<32x196xf32>
    %215 = arith.index_cast %187 : i32 to index
    %c0_72 = arith.constant 0 : index
    %216 = vector.load %arg3[%215, %c0_72] : memref<256x196xf32, #tpu.memory_space<vmem>>, vector<32x196xf32>
    tpu.vector_store %arg3[%215, %c0_72], %214 {strides = array<i32>} : memref<256x196xf32, #tpu.memory_space<vmem>>, vector<32x196xf32>,
    %c7_i32 = arith.constant 7 : i32
    %c32_i32_73 = arith.constant 32 : i32
    %217 = arith.muli %c7_i32, %c32_i32_73 : i32
    %218 = tpu.assume_multiple %217, 32 : i32
    %219 = arith.index_cast %218 : i32 to index
    %c0_74 = arith.constant 0 : index
    %220 = vector.load %arg1[%219, %c0_74] : memref<256x196xf32, #tpu.memory_space<vmem>>, vector<32x196xf32>
    %cst_75 = arith.constant dense<0.000000e+00> : vector<32xf32>
    %221 = vector.multi_reduction <add>, %220, %cst_75 [1] : vector<32x196xf32> to vector<32xf32>
    %222 = vector.shape_cast %221 : vector<32xf32> to vector<32x1xf32>
    %cst_76 = arith.constant 0.00510204071 : f32
    %223 = vector.broadcast %cst_76 : f32 to vector<32x1xf32>
    %224 = arith.mulf %222, %223 : vector<32x1xf32>
    %225 = vector.broadcast %224 : vector<32x1xf32> to vector<32x196xf32>
    %226 = arith.subf %220, %225 : vector<32x196xf32>
    %227 = arith.mulf %226, %226 : vector<32x196xf32>
    %cst_77 = arith.constant dense<0.000000e+00> : vector<32xf32>
    %228 = vector.multi_reduction <add>, %227, %cst_77 [1] : vector<32x196xf32> to vector<32xf32>
    %229 = vector.shape_cast %228 : vector<32xf32> to vector<32x1xf32>
    %cst_78 = arith.constant 0.00510204071 : f32
    %230 = vector.broadcast %cst_78 : f32 to vector<32x1xf32>
    %231 = arith.mulf %229, %230 : vector<32x1xf32>
    %cst_79 = arith.constant 9.99999974E-6 : f32
    %232 = vector.broadcast %cst_79 : f32 to vector<32x1xf32>
    %233 = arith.addf %231, %232 : vector<32x1xf32>
    %234 = math.rsqrt %233 : vector<32x1xf32>
    %235 = arith.index_cast %218 : i32 to index
    %c0_80 = arith.constant 0 : index
    %236 = vector.load %arg2[%235, %c0_80] : memref<256x2xf32, #tpu.memory_space<vmem>>, vector<32x1xf32>
    %237 = arith.index_cast %218 : i32 to index
    %c1_81 = arith.constant 1 : index
    %238 = vector.load %arg2[%237, %c1_81] : memref<256x2xf32, #tpu.memory_space<vmem>>, vector<32x1xf32>
    %239 = arith.mulf %236, %234 : vector<32x1xf32>
    %240 = vector.broadcast %239 : vector<32x1xf32> to vector<32x196xf32>
    %241 = arith.mulf %226, %240 : vector<32x196xf32>
    %242 = vector.broadcast %238 : vector<32x1xf32> to vector<32x196xf32>
    %243 = arith.addf %241, %242 : vector<32x196xf32>
    %cst_82 = arith.constant 0.000000e+00 : f32
    %244 = vector.broadcast %cst_82 : f32 to vector<32x196xf32>
    %245 = arith.maximumf %243, %244 : vector<32x196xf32>
    %246 = arith.index_cast %218 : i32 to index
    %c0_83 = arith.constant 0 : index
    %247 = vector.load %arg3[%246, %c0_83] : memref<256x196xf32, #tpu.memory_space<vmem>>, vector<32x196xf32>
    tpu.vector_store %arg3[%246, %c0_83], %245 {strides = array<i32>} : memref<256x196xf32, #tpu.memory_space<vmem>>, vector<32x196xf32>,
    %c8_i32 = arith.constant 8 : i32
    return
  }
  func.func @transform_0(%arg0: i32) -> (i32, i32) {
    %c0_i32 = arith.constant 0 : i32
    %c0_i32_0 = arith.constant 0 : i32
    %c0_i32_1 = arith.constant 0 : i32
    return %c0_i32, %c0_i32_0 : i32, i32
  }
  func.func @transform_1(%arg0: i32) -> (i32, i32) {
    %c0_i32 = arith.constant 0 : i32
    %c0_i32_0 = arith.constant 0 : i32
    %c0_i32_1 = arith.constant 0 : i32
    return %c0_i32, %c0_i32_0 : i32, i32
  }
  func.func @transform_2(%arg0: i32) -> (i32, i32) {
    %c0_i32 = arith.constant 0 : i32
    %c0_i32_0 = arith.constant 0 : i32
    %c0_i32_1 = arith.constant 0 : i32
    return %c0_i32, %c0_i32_0 : i32, i32
  }
}

</mosaic_0001>

<llo_original>
// kernel: tpu_custom_call.1
$region0: #{tpu_custom_call.1}
  #allocation0 [shape = 'u32[]', space=smem, size = 0x4, offset = 0x4, fixed_abs, tag = 'smem constant byte address 0x4 - core index']
  #allocation1 [shape = 'u32[144,128]{1,0:T(1,128)}', space=vmem, size = 0x12000, scoped, tag = 'internal scratch']
  %s0 = inlined_call_operand.vmem [shape: f32[256,196], index: 0, kind: input, shape index: {}]
  %s1 = inlined_call_operand.vmem [shape: f32[256,2], index: 1, kind: input, shape index: {}]
  %s2 = inlined_call_operand.vmem [shape: f32[256,196], index: 2, kind: output, shape index: {}]
  %s3 = sld [smem:[#allocation0]]
  $region18: #{tpu_custom_call.1} parent=0
    _
  %s5 = ssub.s32 1, %s3
  %s6 = scalar_select 0, %s5, %s3
  // Predicated region
  $region2: #{tpu_custom_call.1} parent=0 // pred_check
    _
  $region3: #{tpu_custom_call.1} parent=0 // pred_check_branch
    %8 = sbr.rel (0) target = $region5
  $region4: #{tpu_custom_call.1} parent=0 // pred_region
    _
  $region5: #{tpu_custom_call.1} parent=0 // pred_fallthru
    _
  // Predicated region
  $region6: #{tpu_custom_call.1} parent=0 // pred_check
    _
  $region7: #{tpu_custom_call.1} parent=0 // pred_check_branch
    %10 = sbr.rel (0) target = $region9
  $region8: #{tpu_custom_call.1} parent=0 // pred_region
    _
  $region9: #{tpu_custom_call.1} parent=0 // pred_fallthru
    _
  %s11 = smul.u32 0, 2
  %s12 = smul.addr %s11, 8
  %s13 = scalar_lea.vmem %s0, %s12
  %v14 = vld [vmem:[%s13] sm:$0xff]
  %v15 = vld [vmem:[%s13 + $0x8] sm:$0xff]
  %v16 = vld [vmem:[%s13 + $0x10] sm:$0xff]
  %v17 = vld [vmem:[%s13 + $0x18] sm:$0xff]
  %v18 = vld [vmem:[%s13 + $0x20] sm:$0xff]
  %v19 = vld [vmem:[%s13 + $0x28] sm:$0xff]
  %v20 = vld [vmem:[%s13 + $0x30] sm:$0xff]
  %v21 = vld [vmem:[%s13 + $0x38] sm:$0xff]
  %vm22 = vcmask 556032
  %v23 = vsel %vm22, %v15, 0.0
  %v24 = vadd.f32 %v14, %v23
  %25 = vadd.xlane.f32.xlu0 %v24
  %v26 = vpop.xlane.xlu0 %25
  %v27 = vsel %vm22, %v17, 0.0
  %v28 = vadd.f32 %v16, %v27
  %29 = vadd.xlane.f32.xlu0 %v28
  %v30 = vpop.xlane.xlu0 %29
  %v31 = vsel %vm22, %v19, 0.0
  %v32 = vadd.f32 %v18, %v31
  %33 = vadd.xlane.f32.xlu0 %v32
  %v34 = vpop.xlane.xlu0 %33
  %v35 = vsel %vm22, %v21, 0.0
  %v36 = vadd.f32 %v20, %v35
  %37 = vadd.xlane.f32.xlu0 %v36
  %v38 = vpop.xlane.xlu0 %37
  %v39 = vmul.f32 %v26, 0.0051020407
  %v40 = vmul.f32 %v30, 0.0051020407
  %v41 = vmul.f32 %v34, 0.0051020407
  %v42 = vmul.f32 %v38, 0.0051020407
  %v43 = vsub.f32 %v14, %v39
  %v44 = vsub.f32 %v15, %v39
  %v45 = vsub.f32 %v16, %v40
  %v46 = vsub.f32 %v17, %v40
  %v47 = vsub.f32 %v18, %v41
  %v48 = vsub.f32 %v19, %v41
  %v49 = vsub.f32 %v20, %v42
  %v50 = vsub.f32 %v21, %v42
  %v51 = vmul.f32 %v43, %v43
  %v52 = vmul.f32 %v44, %v44
  %v53 = vmul.f32 %v45, %v45
  %v54 = vmul.f32 %v46, %v46
  %v55 = vmul.f32 %v47, %v47
  %v56 = vmul.f32 %v48, %v48
  %v57 = vmul.f32 %v49, %v49
  %v58 = vmul.f32 %v50, %v50
  %v59 = vsel %vm22, %v52, 0.0
  %v60 = vadd.f32 %v51, %v59
  %61 = vadd.xlane.f32.xlu0 %v60
  %v62 = vpop.xlane.xlu0 %61
  %v63 = vsel %vm22, %v54, 0.0
  %v64 = vadd.f32 %v53, %v63
  %65 = vadd.xlane.f32.xlu0 %v64
  %v66 = vpop.xlane.xlu0 %65
  %v67 = vsel %vm22, %v56, 0.0
  %v68 = vadd.f32 %v55, %v67
  %69 = vadd.xlane.f32.xlu0 %v68
  %v70 = vpop.xlane.xlu0 %69
  %v71 = vsel %vm22, %v58, 0.0
  %v72 = vadd.f32 %v57, %v71
  %73 = vadd.xlane.f32.xlu0 %v72
  %v74 = vpop.xlane.xlu0 %73
  %v75 = vmul.f32 %v62, 0.0051020407
  %v76 = vmul.f32 %v66, 0.0051020407
  %v77 = vmul.f32 %v70, 0.0051020407
  %v78 = vmul.f32 %v74, 0.0051020407
  %v79 = vadd.f32 %v75, 1e-05
  %v80 = vadd.f32 %v76, 1e-05
  %v81 = vadd.f32 %v77, 1e-05
  %v82 = vadd.f32 %v78, 1e-05
  %v83 = vrsqrt.pop %v79
  %v84 = vrsqrt.pop %v80
  %v85 = vrsqrt.pop %v81
  %v86 = vrsqrt.pop %v82
  %v87 = vld [vmem:[%s1] sm:$0xff]
  %v88 = vld [vmem:[%s1 + $0x8] sm:$0xff]
  %v89 = vld [vmem:[%s1 + $0x10] sm:$0xff]
  %v90 = vld [vmem:[%s1 + $0x18] sm:$0xff]
  %v91 = vmul.f32 %v87, %v83
  %v92 = vmul.f32 %v88, %v84
  %v93 = vmul.f32 %v89, %v85
  %v94 = vmul.f32 %v90, %v86
  %96 = vset.pattern.permute.xlu0 0
  %97 = vperm.xlu0 %96, %v91
  %v98 = vpop.permute.xlu0 %97
  %101 = vset.pattern.permute.xlu0 0
  %102 = vperm.xlu0 %101, %v92
  %v103 = vpop.permute.xlu0 %102
  %106 = vset.pattern.permute.xlu0 0
  %107 = vperm.xlu0 %106, %v93
  %v108 = vpop.permute.xlu0 %107
  %111 = vset.pattern.permute.xlu0 0
  %112 = vperm.xlu0 %111, %v94
  %v113 = vpop.permute.xlu0 %112
  %v115 = vmul.f32 %v43, %v98
  %v116 = vmul.f32 %v44, %v98
  %v117 = vmul.f32 %v45, %v103
  %v118 = vmul.f32 %v46, %v103
  %v119 = vmul.f32 %v47, %v108
  %v120 = vmul.f32 %v48, %v108
  %v121 = vmul.f32 %v49, %v113
  %v122 = vmul.f32 %v50, %v113
  %124 = vset.pattern.permute.xlu0 1
  %125 = vperm.xlu0 %124, %v87
  %v126 = vpop.permute.xlu0 %125
  %129 = vset.pattern.permute.xlu0 1
  %130 = vperm.xlu0 %129, %v88
  %v131 = vpop.permute.xlu0 %130
  %134 = vset.pattern.permute.xlu0 1
  %135 = vperm.xlu0 %134, %v89
  %v136 = vpop.permute.xlu0 %135
  %139 = vset.pattern.permute.xlu0 1
  %140 = vperm.xlu0 %139, %v90
  %v141 = vpop.permute.xlu0 %140
  %v143 = vadd.f32 %v115, %v126
  %v144 = vadd.f32 %v116, %v126
  %v145 = vadd.f32 %v117, %v131
  %v146 = vadd.f32 %v118, %v131
  %v147 = vadd.f32 %v119, %v136
  %v148 = vadd.f32 %v120, %v136
  %v149 = vadd.f32 %v121, %v141
  %v150 = vadd.f32 %v122, %v141
  %v151 = vmax.f32 %v143, 0.0
  %v152 = vmax.f32 %v144, 0.0
  %v153 = vmax.f32 %v145, 0.0
  %v154 = vmax.f32 %v146, 0.0
  %v155 = vmax.f32 %v147, 0.0
  %v156 = vmax.f32 %v148, 0.0
  %v157 = vmax.f32 %v149, 0.0
  %v158 = vmax.f32 %v150, 0.0
  %s159 = smul.addr %s11, 8
  %s160 = scalar_lea.vmem %s2, %s159
  %161 = vst [vmem:[%s160] sm:$0xff] %v151
  %162 = vst.msk [vmem:[%s160 + $0x8] sm:$0xff] %vm22, %v152
  %163 = vst [vmem:[%s160 + $0x10] sm:$0xff] %v153
  %164 = vst.msk [vmem:[%s160 + $0x18] sm:$0xff] %vm22, %v154
  %165 = vst [vmem:[%s160 + $0x20] sm:$0xff] %v155
  %166 = vst.msk [vmem:[%s160 + $0x28] sm:$0xff] %vm22, %v156
  %167 = vst [vmem:[%s160 + $0x30] sm:$0xff] %v157
  %168 = vst.msk [vmem:[%s160 + $0x38] sm:$0xff] %vm22, %v158
  %s169 = smul.u32 4, 2
  %s170 = smul.addr %s169, 8
  %s171 = scalar_lea.vmem %s0, %s170
  %v172 = vld [vmem:[%s171] sm:$0xff]
  %v173 = vld [vmem:[%s171 + $0x8] sm:$0xff]
  %v174 = vld [vmem:[%s171 + $0x10] sm:$0xff]
  %v175 = vld [vmem:[%s171 + $0x18] sm:$0xff]
  %v176 = vld [vmem:[%s171 + $0x20] sm:$0xff]
  %v177 = vld [vmem:[%s171 + $0x28] sm:$0xff]
  %v178 = vld [vmem:[%s171 + $0x30] sm:$0xff]
  %v179 = vld [vmem:[%s171 + $0x38] sm:$0xff]
  %v180 = vsel %vm22, %v173, 0.0
  %v181 = vadd.f32 %v172, %v180
  %182 = vadd.xlane.f32.xlu0 %v181
  %v183 = vpop.xlane.xlu0 %182
  %v184 = vsel %vm22, %v175, 0.0
  %v185 = vadd.f32 %v174, %v184
  %186 = vadd.xlane.f32.xlu0 %v185
  %v187 = vpop.xlane.xlu0 %186
  %v188 = vsel %vm22, %v177, 0.0
  %v189 = vadd.f32 %v176, %v188
  %190 = vadd.xlane.f32.xlu0 %v189
  %v191 = vpop.xlane.xlu0 %190
  %v192 = vsel %vm22, %v179, 0.0
  %v193 = vadd.f32 %v178, %v192
  %194 = vadd.xlane.f32.xlu0 %v193
  %v195 = vpop.xlane.xlu0 %194
  %v196 = vmul.f32 %v183, 0.0051020407
  %v197 = vmul.f32 %v187, 0.0051020407
  %v198 = vmul.f32 %v191, 0.0051020407
  %v199 = vmul.f32 %v195, 0.0051020407
  %v200 = vsub.f32 %v172, %v196
  %v201 = vsub.f32 %v173, %v196
  %v202 = vsub.f32 %v174, %v197
  %v203 = vsub.f32 %v175, %v197
  %v204 = vsub.f32 %v176, %v198
  %v205 = vsub.f32 %v177, %v198
  %v206 = vsub.f32 %v178, %v199
  %v207 = vsub.f32 %v179, %v199
  %v208 = vmul.f32 %v200, %v200
  %v209 = vmul.f32 %v201, %v201
  %v210 = vmul.f32 %v202, %v202
  %v211 = vmul.f32 %v203, %v203
  %v212 = vmul.f32 %v204, %v204
  %v213 = vmul.f32 %v205, %v205
  %v214 = vmul.f32 %v206, %v206
  %v215 = vmul.f32 %v207, %v207
  %v216 = vsel %vm22, %v209, 0.0
  %v217 = vadd.f32 %v208, %v216
  %218 = vadd.xlane.f32.xlu0 %v217
  %v219 = vpop.xlane.xlu0 %218
  %v220 = vsel %vm22, %v211, 0.0
  %v221 = vadd.f32 %v210, %v220
  %222 = vadd.xlane.f32.xlu0 %v221
  %v223 = vpop.xlane.xlu0 %222
  %v224 = vsel %vm22, %v213, 0.0
  %v225 = vadd.f32 %v212, %v224
  %226 = vadd.xlane.f32.xlu0 %v225
  %v227 = vpop.xlane.xlu0 %226
  %v228 = vsel %vm22, %v215, 0.0
  %v229 = vadd.f32 %v214, %v228
  %230 = vadd.xlane.f32.xlu0 %v229
  %v231 = vpop.xlane.xlu0 %230
  %v232 = vmul.f32 %v219, 0.0051020407
  %v233 = vmul.f32 %v223, 0.0051020407
  %v234 = vmul.f32 %v227, 0.0051020407
  %v235 = vmul.f32 %v231, 0.0051020407
  %v236 = vadd.f32 %v232, 1e-05
  %v237 = vadd.f32 %v233, 1e-05
  %v238 = vadd.f32 %v234, 1e-05
  %v239 = vadd.f32 %v235, 1e-05
  %v240 = vrsqrt.pop %v236
  %v241 = vrsqrt.pop %v237
  %v242 = vrsqrt.pop %v238
  %v243 = vrsqrt.pop %v239
  %s244 = scalar_lea.vmem %s1, 32
  %v245 = vld [vmem:[%s244] sm:$0xff]
  %v246 = vld [vmem:[%s244 + $0x8] sm:$0xff]
  %v247 = vld [vmem:[%s244 + $0x10] sm:$0xff]
  %v248 = vld [vmem:[%s244 + $0x18] sm:$0xff]
  %v249 = vmul.f32 %v245, %v240
  %v250 = vmul.f32 %v246, %v241
  %v251 = vmul.f32 %v247, %v242
  %v252 = vmul.f32 %v248, %v243
  %254 = vset.pattern.permute.xlu0 0
  %255 = vperm.xlu0 %254, %v249
  %v256 = vpop.permute.xlu0 %255
  %259 = vset.pattern.permute.xlu0 0
  %260 = vperm.xlu0 %259, %v250
  %v261 = vpop.permute.xlu0 %260
  %264 = vset.pattern.permute.xlu0 0
  %265 = vperm.xlu0 %264, %v251
  %v266 = vpop.permute.xlu0 %265
  %269 = vset.pattern.permute.xlu0 0
  %270 = vperm.xlu0 %269, %v252
  %v271 = vpop.permute.xlu0 %270
  %v273 = vmul.f32 %v200, %v256
  %v274 = vmul.f32 %v201, %v256
  %v275 = vmul.f32 %v202, %v261
  %v276 = vmul.f32 %v203, %v261
  %v277 = vmul.f32 %v204, %v266
  %v278 = vmul.f32 %v205, %v266
  %v279 = vmul.f32 %v206, %v271
  %v280 = vmul.f32 %v207, %v271
  %282 = vset.pattern.permute.xlu0 1
  %283 = vperm.xlu0 %282, %v245
  %v284 = vpop.permute.xlu0 %283
  %287 = vset.pattern.permute.xlu0 1
  %288 = vperm.xlu0 %287, %v246
  %v289 = vpop.permute.xlu0 %288
  %292 = vset.pattern.permute.xlu0 1
  %293 = vperm.xlu0 %292, %v247
  %v294 = vpop.permute.xlu0 %293
  %297 = vset.pattern.permute.xlu0 1
  %298 = vperm.xlu0 %297, %v248
  %v299 = vpop.permute.xlu0 %298
  %v301 = vadd.f32 %v273, %v284
  %v302 = vadd.f32 %v274, %v284
  %v303 = vadd.f32 %v275, %v289
  %v304 = vadd.f32 %v276, %v289
  %v305 = vadd.f32 %v277, %v294
  %v306 = vadd.f32 %v278, %v294
  %v307 = vadd.f32 %v279, %v299
  %v308 = vadd.f32 %v280, %v299
  %v309 = vmax.f32 %v301, 0.0
  %v310 = vmax.f32 %v302, 0.0
  %v311 = vmax.f32 %v303, 0.0
  %v312 = vmax.f32 %v304, 0.0
  %v313 = vmax.f32 %v305, 0.0
  %v314 = vmax.f32 %v306, 0.0
  %v315 = vmax.f32 %v307, 0.0
  %v316 = vmax.f32 %v308, 0.0
  %s317 = smul.addr %s169, 8
  %s318 = scalar_lea.vmem %s2, %s317
  %319 = vst [vmem:[%s318] sm:$0xff] %v309
  %320 = vst.msk [vmem:[%s318 + $0x8] sm:$0xff] %vm22, %v310
  %321 = vst [vmem:[%s318 + $0x10] sm:$0xff] %v311
  %322 = vst.msk [vmem:[%s318 + $0x18] sm:$0xff] %vm22, %v312
  %323 = vst [vmem:[%s318 + $0x20] sm:$0xff] %v313
  %324 = vst.msk [vmem:[%s318 + $0x28] sm:$0xff] %vm22, %v314
  %325 = vst [vmem:[%s318 + $0x30] sm:$0xff] %v315
  %326 = vst.msk [vmem:[%s318 + $0x38] sm:$0xff] %vm22, %v316
  %s327 = smul.u32 8, 2
  %s328 = smul.addr %s327, 8
  %s329 = scalar_lea.vmem %s0, %s328
  %v330 = vld [vmem:[%s329] sm:$0xff]
  %v331 = vld [vmem:[%s329 + $0x8] sm:$0xff]
  %v332 = vld [vmem:[%s329 + $0x10] sm:$0xff]
  %v333 = vld [vmem:[%s329 + $0x18] sm:$0xff]
  %v334 = vld [vmem:[%s329 + $0x20] sm:$0xff]
  %v335 = vld [vmem:[%s329 + $0x28] sm:$0xff]
  %v336 = vld [vmem:[%s329 + $0x30] sm:$0xff]
  %v337 = vld [vmem:[%s329 + $0x38] sm:$0xff]
  %v338 = vsel %vm22, %v331, 0.0
  %v339 = vadd.f32 %v330, %v338
  %340 = vadd.xlane.f32.xlu0 %v339
  %v341 = vpop.xlane.xlu0 %340
  %v342 = vsel %vm22, %v333, 0.0
  %v343 = vadd.f32 %v332, %v342
  %344 = vadd.xlane.f32.xlu0 %v343
  %v345 = vpop.xlane.xlu0 %344
  %v346 = vsel %vm22, %v335, 0.0
  %v347 = vadd.f32 %v334, %v346
  %348 = vadd.xlane.f32.xlu0 %v347
  %v349 = vpop.xlane.xlu0 %348
  %v350 = vsel %vm22, %v337, 0.0
  %v351 = vadd.f32 %v336, %v350
  %352 = vadd.xlane.f32.xlu0 %v351
  %v353 = vpop.xlane.xlu0 %352
  %v354 = vmul.f32 %v341, 0.0051020407
  %v355 = vmul.f32 %v345, 0.0051020407
  %v356 = vmul.f32 %v349, 0.0051020407
  %v357 = vmul.f32 %v353, 0.0051020407
  %v358 = vsub.f32 %v330, %v354
  %v359 = vsub.f32 %v331, %v354
  %v360 = vsub.f32 %v332, %v355
  %v361 = vsub.f32 %v333, %v355
  %v362 = vsub.f32 %v334, %v356
  %v363 = vsub.f32 %v335, %v356
  %v364 = vsub.f32 %v336, %v357
  %v365 = vsub.f32 %v337, %v357
  %v366 = vmul.f32 %v358, %v358
  %v367 = vmul.f32 %v359, %v359
  %v368 = vmul.f32 %v360, %v360
  %v369 = vmul.f32 %v361, %v361
  %v370 = vmul.f32 %v362, %v362
  %v371 = vmul.f32 %v363, %v363
  %v372 = vmul.f32 %v364, %v364
  %v373 = vmul.f32 %v365, %v365
  %v374 = vsel %vm22, %v367, 0.0
  %v375 = vadd.f32 %v366, %v374
  %376 = vadd.xlane.f32.xlu0 %v375
  %v377 = vpop.xlane.xlu0 %376
  %v378 = vsel %vm22, %v369, 0.0
  %v379 = vadd.f32 %v368, %v378
  %380 = vadd.xlane.f32.xlu0 %v379
  %v381 = vpop.xlane.xlu0 %380
  %v382 = vsel %vm22, %v371, 0.0
  %v383 = vadd.f32 %v370, %v382
  %384 = vadd.xlane.f32.xlu0 %v383
  %v385 = vpop.xlane.xlu0 %384
  %v386 = vsel %vm22, %v373, 0.0
  %v387 = vadd.f32 %v372, %v386
  %388 = vadd.xlane.f32.xlu0 %v387
  %v389 = vpop.xlane.xlu0 %388
  %v390 = vmul.f32 %v377, 0.0051020407
  %v391 = vmul.f32 %v381, 0.0051020407
  %v392 = vmul.f32 %v385, 0.0051020407
  %v393 = vmul.f32 %v389, 0.0051020407
  %v394 = vadd.f32 %v390, 1e-05
  %v395 = vadd.f32 %v391, 1e-05
  %v396 = vadd.f32 %v392, 1e-05
  %v397 = vadd.f32 %v393, 1e-05
  %v398 = vrsqrt.pop %v394
  %v399 = vrsqrt.pop %v395
  %v400 = vrsqrt.pop %v396
  %v401 = vrsqrt.pop %v397
  %s402 = scalar_lea.vmem %s1, 64
  %v403 = vld [vmem:[%s402] sm:$0xff]
  %v404 = vld [vmem:[%s402 + $0x8] sm:$0xff]
  %v405 = vld [vmem:[%s402 + $0x10] sm:$0xff]
  %v406 = vld [vmem:[%s402 + $0x18] sm:$0xff]
  %v407 = vmul.f32 %v403, %v398
  %v408 = vmul.f32 %v404, %v399
  %v409 = vmul.f32 %v405, %v400
  %v410 = vmul.f32 %v406, %v401
  %412 = vset.pattern.permute.xlu0 0
  %413 = vperm.xlu0 %412, %v407
  %v414 = vpop.permute.xlu0 %413
  %417 = vset.pattern.permute.xlu0 0
  %418 = vperm.xlu0 %417, %v408
  %v419 = vpop.permute.xlu0 %418
  %422 = vset.pattern.permute.xlu0 0
  %423 = vperm.xlu0 %422, %v409
  %v424 = vpop.permute.xlu0 %423
  %427 = vset.pattern.permute.xlu0 0
  %428 = vperm.xlu0 %427, %v410
  %v429 = vpop.permute.xlu0 %428
  %v431 = vmul.f32 %v358, %v414
  %v432 = vmul.f32 %v359, %v414
  %v433 = vmul.f32 %v360, %v419
  %v434 = vmul.f32 %v361, %v419
  %v435 = vmul.f32 %v362, %v424
  %v436 = vmul.f32 %v363, %v424
  %v437 = vmul.f32 %v364, %v429
  %v438 = vmul.f32 %v365, %v429
  %440 = vset.pattern.permute.xlu0 1
  %441 = vperm.xlu0 %440, %v403
  %v442 = vpop.permute.xlu0 %441
  %445 = vset.pattern.permute.xlu0 1
  %446 = vperm.xlu0 %445, %v404
  %v447 = vpop.permute.xlu0 %446
  %450 = vset.pattern.permute.xlu0 1
  %451 = vperm.xlu0 %450, %v405
  %v452 = vpop.permute.xlu0 %451
  %455 = vset.pattern.permute.xlu0 1
  %456 = vperm.xlu0 %455, %v406
  %v457 = vpop.permute.xlu0 %456
  %v459 = vadd.f32 %v431, %v442
  %v460 = vadd.f32 %v432, %v442
  %v461 = vadd.f32 %v433, %v447
  %v462 = vadd.f32 %v434, %v447
  %v463 = vadd.f32 %v435, %v452
  %v464 = vadd.f32 %v436, %v452
  %v465 = vadd.f32 %v437, %v457
  %v466 = vadd.f32 %v438, %v457
  %v467 = vmax.f32 %v459, 0.0
  %v468 = vmax.f32 %v460, 0.0
  %v469 = vmax.f32 %v461, 0.0
  %v470 = vmax.f32 %v462, 0.0
  %v471 = vmax.f32 %v463, 0.0
  %v472 = vmax.f32 %v464, 0.0
  %v473 = vmax.f32 %v465, 0.0
  %v474 = vmax.f32 %v466, 0.0
  %s475 = smul.addr %s327, 8
  %s476 = scalar_lea.vmem %s2, %s475
  %477 = vst [vmem:[%s476] sm:$0xff] %v467
  %478 = vst.msk [vmem:[%s476 + $0x8] sm:$0xff] %vm22, %v468
  %479 = vst [vmem:[%s476 + $0x10] sm:$0xff] %v469
  %480 = vst.msk [vmem:[%s476 + $0x18] sm:$0xff] %vm22, %v470
  %481 = vst [vmem:[%s476 + $0x20] sm:$0xff] %v471
  %482 = vst.msk [vmem:[%s476 + $0x28] sm:$0xff] %vm22, %v472
  %483 = vst [vmem:[%s476 + $0x30] sm:$0xff] %v473
  %484 = vst.msk [vmem:[%s476 + $0x38] sm:$0xff] %vm22, %v474
  %s485 = smul.u32 12, 2
  %s486 = smul.addr %s485, 8
  %s487 = scalar_lea.vmem %s0, %s486
  %v488 = vld [vmem:[%s487] sm:$0xff]
  %v489 = vld [vmem:[%s487 + $0x8] sm:$0xff]
  %v490 = vld [vmem:[%s487 + $0x10] sm:$0xff]
  %v491 = vld [vmem:[%s487 + $0x18] sm:$0xff]
  %v492 = vld [vmem:[%s487 + $0x20] sm:$0xff]
  %v493 = vld [vmem:[%s487 + $0x28] sm:$0xff]
  %v494 = vld [vmem:[%s487 + $0x30] sm:$0xff]
  %v495 = vld [vmem:[%s487 + $0x38] sm:$0xff]
  %v496 = vsel %vm22, %v489, 0.0
  %v497 = vadd.f32 %v488, %v496
  %498 = vadd.xlane.f32.xlu0 %v497
  %v499 = vpop.xlane.xlu0 %498
  %v500 = vsel %vm22, %v491, 0.0
  %v501 = vadd.f32 %v490, %v500
  %502 = vadd.xlane.f32.xlu0 %v501
  %v503 = vpop.xlane.xlu0 %502
  %v504 = vsel %vm22, %v493, 0.0
  %v505 = vadd.f32 %v492, %v504
  %506 = vadd.xlane.f32.xlu0 %v505
  %v507 = vpop.xlane.xlu0 %506
  %v508 = vsel %vm22, %v495, 0.0
  %v509 = vadd.f32 %v494, %v508
  %510 = vadd.xlane.f32.xlu0 %v509
  %v511 = vpop.xlane.xlu0 %510
  %v512 = vmul.f32 %v499, 0.0051020407
  %v513 = vmul.f32 %v503, 0.0051020407
  %v514 = vmul.f32 %v507, 0.0051020407
  %v515 = vmul.f32 %v511, 0.0051020407
  %v516 = vsub.f32 %v488, %v512
  %v517 = vsub.f32 %v489, %v512
  %v518 = vsub.f32 %v490, %v513
  %v519 = vsub.f32 %v491, %v513
  %v520 = vsub.f32 %v492, %v514
  %v521 = vsub.f32 %v493, %v514
  %v522 = vsub.f32 %v494, %v515
  %v523 = vsub.f32 %v495, %v515
  %v524 = vmul.f32 %v516, %v516
  %v525 = vmul.f32 %v517, %v517
  %v526 = vmul.f32 %v518, %v518
  %v527 = vmul.f32 %v519, %v519
  %v528 = vmul.f32 %v520, %v520
  %v529 = vmul.f32 %v521, %v521
  %v530 = vmul.f32 %v522, %v522
  %v531 = vmul.f32 %v523, %v523
  %v532 = vsel %vm22, %v525, 0.0
  %v533 = vadd.f32 %v524, %v532
  %534 = vadd.xlane.f32.xlu0 %v533
  %v535 = vpop.xlane.xlu0 %534
  %v536 = vsel %vm22, %v527, 0.0
  %v537 = vadd.f32 %v526, %v536
  %538 = vadd.xlane.f32.xlu0 %v537
  %v539 = vpop.xlane.xlu0 %538
  %v540 = vsel %vm22, %v529, 0.0
  %v541 = vadd.f32 %v528, %v540
  %542 = vadd.xlane.f32.xlu0 %v541
  %v543 = vpop.xlane.xlu0 %542
  %v544 = vsel %vm22, %v531, 0.0
  %v545 = vadd.f32 %v530, %v544
  %546 = vadd.xlane.f32.xlu0 %v545
  %v547 = vpop.xlane.xlu0 %546
  %v548 = vmul.f32 %v535, 0.0051020407
  %v549 = vmul.f32 %v539, 0.0051020407
  %v550 = vmul.f32 %v543, 0.0051020407
  %v551 = vmul.f32 %v547, 0.0051020407
  %v552 = vadd.f32 %v548, 1e-05
  %v553 = vadd.f32 %v549, 1e-05
  %v554 = vadd.f32 %v550, 1e-05
  %v555 = vadd.f32 %v551, 1e-05
  %v556 = vrsqrt.pop %v552
  %v557 = vrsqrt.pop %v553
  %v558 = vrsqrt.pop %v554
  %v559 = vrsqrt.pop %v555
  %s560 = scalar_lea.vmem %s1, 96
  %v561 = vld [vmem:[%s560] sm:$0xff]
  %v562 = vld [vmem:[%s560 + $0x8] sm:$0xff]
  %v563 = vld [vmem:[%s560 + $0x10] sm:$0xff]
  %v564 = vld [vmem:[%s560 + $0x18] sm:$0xff]
  %v565 = vmul.f32 %v561, %v556
  %v566 = vmul.f32 %v562, %v557
  %v567 = vmul.f32 %v563, %v558
  %v568 = vmul.f32 %v564, %v559
  %570 = vset.pattern.permute.xlu0 0
  %571 = vperm.xlu0 %570, %v565
  %v572 = vpop.permute.xlu0 %571
  %575 = vset.pattern.permute.xlu0 0
  %576 = vperm.xlu0 %575, %v566
  %v577 = vpop.permute.xlu0 %576
  %580 = vset.pattern.permute.xlu0 0
  %581 = vperm.xlu0 %580, %v567
  %v582 = vpop.permute.xlu0 %581
  %585 = vset.pattern.permute.xlu0 0
  %586 = vperm.xlu0 %585, %v568
  %v587 = vpop.permute.xlu0 %586
  %v589 = vmul.f32 %v516, %v572
  %v590 = vmul.f32 %v517, %v572
  %v591 = vmul.f32 %v518, %v577
  %v592 = vmul.f32 %v519, %v577
  %v593 = vmul.f32 %v520, %v582
  %v594 = vmul.f32 %v521, %v582
  %v595 = vmul.f32 %v522, %v587
  %v596 = vmul.f32 %v523, %v587
  %598 = vset.pattern.permute.xlu0 1
  %599 = vperm.xlu0 %598, %v561
  %v600 = vpop.permute.xlu0 %599
  %603 = vset.pattern.permute.xlu0 1
  %604 = vperm.xlu0 %603, %v562
  %v605 = vpop.permute.xlu0 %604
  %608 = vset.pattern.permute.xlu0 1
  %609 = vperm.xlu0 %608, %v563
  %v610 = vpop.permute.xlu0 %609
  %613 = vset.pattern.permute.xlu0 1
  %614 = vperm.xlu0 %613, %v564
  %v615 = vpop.permute.xlu0 %614
  %v617 = vadd.f32 %v589, %v600
  %v618 = vadd.f32 %v590, %v600
  %v619 = vadd.f32 %v591, %v605
  %v620 = vadd.f32 %v592, %v605
  %v621 = vadd.f32 %v593, %v610
  %v622 = vadd.f32 %v594, %v610
  %v623 = vadd.f32 %v595, %v615
  %v624 = vadd.f32 %v596, %v615
  %v625 = vmax.f32 %v617, 0.0
  %v626 = vmax.f32 %v618, 0.0
  %v627 = vmax.f32 %v619, 0.0
  %v628 = vmax.f32 %v620, 0.0
  %v629 = vmax.f32 %v621, 0.0
  %v630 = vmax.f32 %v622, 0.0
  %v631 = vmax.f32 %v623, 0.0
  %v632 = vmax.f32 %v624, 0.0
  %s633 = smul.addr %s485, 8
  %s634 = scalar_lea.vmem %s2, %s633
  %635 = vst [vmem:[%s634] sm:$0xff] %v625
  %636 = vst.msk [vmem:[%s634 + $0x8] sm:$0xff] %vm22, %v626
  %637 = vst [vmem:[%s634 + $0x10] sm:$0xff] %v627
  %638 = vst.msk [vmem:[%s634 + $0x18] sm:$0xff] %vm22, %v628
  %639 = vst [vmem:[%s634 + $0x20] sm:$0xff] %v629
  %640 = vst.msk [vmem:[%s634 + $0x28] sm:$0xff] %vm22, %v630
  %641 = vst [vmem:[%s634 + $0x30] sm:$0xff] %v631
  %642 = vst.msk [vmem:[%s634 + $0x38] sm:$0xff] %vm22, %v632
  %s643 = smul.u32 16, 2
  %s644 = smul.addr %s643, 8
  %s645 = scalar_lea.vmem %s0, %s644
  %v646 = vld [vmem:[%s645] sm:$0xff]
  %v647 = vld [vmem:[%s645 + $0x8] sm:$0xff]
  %v648 = vld [vmem:[%s645 + $0x10] sm:$0xff]
  %v649 = vld [vmem:[%s645 + $0x18] sm:$0xff]
  %v650 = vld [vmem:[%s645 + $0x20] sm:$0xff]
  %v651 = vld [vmem:[%s645 + $0x28] sm:$0xff]
  %v652 = vld [vmem:[%s645 + $0x30] sm:$0xff]
  %v653 = vld [vmem:[%s645 + $0x38] sm:$0xff]
  %v654 = vsel %vm22, %v647, 0.0
  %v655 = vadd.f32 %v646, %v654
  %656 = vadd.xlane.f32.xlu0 %v655
  %v657 = vpop.xlane.xlu0 %656
  %v658 = vsel %vm22, %v649, 0.0
  %v659 = vadd.f32 %v648, %v658
  %660 = vadd.xlane.f32.xlu0 %v659
  %v661 = vpop.xlane.xlu0 %660
  %v662 = vsel %vm22, %v651, 0.0
  %v663 = vadd.f32 %v650, %v662
  %664 = vadd.xlane.f32.xlu0 %v663
  %v665 = vpop.xlane.xlu0 %664
  %v666 = vsel %vm22, %v653, 0.0
  %v667 = vadd.f32 %v652, %v666
  %668 = vadd.xlane.f32.xlu0 %v667
  %v669 = vpop.xlane.xlu0 %668
  %v670 = vmul.f32 %v657, 0.0051020407
  %v671 = vmul.f32 %v661, 0.0051020407
  %v672 = vmul.f32 %v665, 0.0051020407
  %v673 = vmul.f32 %v669, 0.0051020407
  %v674 = vsub.f32 %v646, %v670
  %v675 = vsub.f32 %v647, %v670
  %v676 = vsub.f32 %v648, %v671
  %v677 = vsub.f32 %v649, %v671
  %v678 = vsub.f32 %v650, %v672
  %v679 = vsub.f32 %v651, %v672
  %v680 = vsub.f32 %v652, %v673
  %v681 = vsub.f32 %v653, %v673
  %v682 = vmul.f32 %v674, %v674
  %v683 = vmul.f32 %v675, %v675
  %v684 = vmul.f32 %v676, %v676
  %v685 = vmul.f32 %v677, %v677
  %v686 = vmul.f32 %v678, %v678
  %v687 = vmul.f32 %v679, %v679
  %v688 = vmul.f32 %v680, %v680
  %v689 = vmul.f32 %v681, %v681
  %v690 = vsel %vm22, %v683, 0.0
  %v691 = vadd.f32 %v682, %v690
  %692 = vadd.xlane.f32.xlu0 %v691
  %v693 = vpop.xlane.xlu0 %692
  %v694 = vsel %vm22, %v685, 0.0
  %v695 = vadd.f32 %v684, %v694
  %696 = vadd.xlane.f32.xlu0 %v695
  %v697 = vpop.xlane.xlu0 %696
  %v698 = vsel %vm22, %v687, 0.0
  %v699 = vadd.f32 %v686, %v698
  %700 = vadd.xlane.f32.xlu0 %v699
  %v701 = vpop.xlane.xlu0 %700
  %v702 = vsel %vm22, %v689, 0.0
  %v703 = vadd.f32 %v688, %v702
  %704 = vadd.xlane.f32.xlu0 %v703
  %v705 = vpop.xlane.xlu0 %704
  %v706 = vmul.f32 %v693, 0.0051020407
  %v707 = vmul.f32 %v697, 0.0051020407
  %v708 = vmul.f32 %v701, 0.0051020407
  %v709 = vmul.f32 %v705, 0.0051020407
  %v710 = vadd.f32 %v706, 1e-05
  %v711 = vadd.f32 %v707, 1e-05
  %v712 = vadd.f32 %v708, 1e-05
  %v713 = vadd.f32 %v709, 1e-05
  %v714 = vrsqrt.pop %v710
  %v715 = vrsqrt.pop %v711
  %v716 = vrsqrt.pop %v712
  %v717 = vrsqrt.pop %v713
  %s718 = scalar_lea.vmem %s1, 128
  %v719 = vld [vmem:[%s718] sm:$0xff]
  %v720 = vld [vmem:[%s718 + $0x8] sm:$0xff]
  %v721 = vld [vmem:[%s718 + $0x10] sm:$0xff]
  %v722 = vld [vmem:[%s718 + $0x18] sm:$0xff]
  %v723 = vmul.f32 %v719, %v714
  %v724 = vmul.f32 %v720, %v715
  %v725 = vmul.f32 %v721, %v716
  %v726 = vmul.f32 %v722, %v717
  %728 = vset.pattern.permute.xlu0 0
  %729 = vperm.xlu0 %728, %v723
  %v730 = vpop.permute.xlu0 %729
  %733 = vset.pattern.permute.xlu0 0
  %734 = vperm.xlu0 %733, %v724
  %v735 = vpop.permute.xlu0 %734
  %738 = vset.pattern.permute.xlu0 0
  %739 = vperm.xlu0 %738, %v725
  %v740 = vpop.permute.xlu0 %739
  %743 = vset.pattern.permute.xlu0 0
  %744 = vperm.xlu0 %743, %v726
  %v745 = vpop.permute.xlu0 %744
  %v747 = vmul.f32 %v674, %v730
  %v748 = vmul.f32 %v675, %v730
  %v749 = vmul.f32 %v676, %v735
  %v750 = vmul.f32 %v677, %v735
  %v751 = vmul.f32 %v678, %v740
  %v752 = vmul.f32 %v679, %v740
  %v753 = vmul.f32 %v680, %v745
  %v754 = vmul.f32 %v681, %v745
  %756 = vset.pattern.permute.xlu0 1
  %757 = vperm.xlu0 %756, %v719
  %v758 = vpop.permute.xlu0 %757
  %761 = vset.pattern.permute.xlu0 1
  %762 = vperm.xlu0 %761, %v720
  %v763 = vpop.permute.xlu0 %762
  %766 = vset.pattern.permute.xlu0 1
  %767 = vperm.xlu0 %766, %v721
  %v768 = vpop.permute.xlu0 %767
  %771 = vset.pattern.permute.xlu0 1
  %772 = vperm.xlu0 %771, %v722
  %v773 = vpop.permute.xlu0 %772
  %v775 = vadd.f32 %v747, %v758
  %v776 = vadd.f32 %v748, %v758
  %v777 = vadd.f32 %v749, %v763
  %v778 = vadd.f32 %v750, %v763
  %v779 = vadd.f32 %v751, %v768
  %v780 = vadd.f32 %v752, %v768
  %v781 = vadd.f32 %v753, %v773
  %v782 = vadd.f32 %v754, %v773
  %v783 = vmax.f32 %v775, 0.0
  %v784 = vmax.f32 %v776, 0.0
  %v785 = vmax.f32 %v777, 0.0
  %v786 = vmax.f32 %v778, 0.0
  %v787 = vmax.f32 %v779, 0.0
  %v788 = vmax.f32 %v780, 0.0
  %v789 = vmax.f32 %v781, 0.0
  %v790 = vmax.f32 %v782, 0.0
  %s791 = smul.addr %s643, 8
  %s792 = scalar_lea.vmem %s2, %s791
  %793 = vst [vmem:[%s792] sm:$0xff] %v783
  %794 = vst.msk [vmem:[%s792 + $0x8] sm:$0xff] %vm22, %v784
  %795 = vst [vmem:[%s792 + $0x10] sm:$0xff] %v785
  %796 = vst.msk [vmem:[%s792 + $0x18] sm:$0xff] %vm22, %v786
  %797 = vst [vmem:[%s792 + $0x20] sm:$0xff] %v787
  %798 = vst.msk [vmem:[%s792 + $0x28] sm:$0xff] %vm22, %v788
  %799 = vst [vmem:[%s792 + $0x30] sm:$0xff] %v789
  %800 = vst.msk [vmem:[%s792 + $0x38] sm:$0xff] %vm22, %v790
  %s801 = smul.u32 20, 2
  %s802 = smul.addr %s801, 8
  %s803 = scalar_lea.vmem %s0, %s802
  %v804 = vld [vmem:[%s803] sm:$0xff]
  %v805 = vld [vmem:[%s803 + $0x8] sm:$0xff]
  %v806 = vld [vmem:[%s803 + $0x10] sm:$0xff]
  %v807 = vld [vmem:[%s803 + $0x18] sm:$0xff]
  %v808 = vld [vmem:[%s803 + $0x20] sm:$0xff]
  %v809 = vld [vmem:[%s803 + $0x28] sm:$0xff]
  %v810 = vld [vmem:[%s803 + $0x30] sm:$0xff]
  %v811 = vld [vmem:[%s803 + $0x38] sm:$0xff]
  %v812 = vsel %vm22, %v805, 0.0
  %v813 = vadd.f32 %v804, %v812
  %814 = vadd.xlane.f32.xlu0 %v813
  %v815 = vpop.xlane.xlu0 %814
  %v816 = vsel %vm22, %v807, 0.0
  %v817 = vadd.f32 %v806, %v816
  %818 = vadd.xlane.f32.xlu0 %v817
  %v819 = vpop.xlane.xlu0 %818
  %v820 = vsel %vm22, %v809, 0.0
  %v821 = vadd.f32 %v808, %v820
  %822 = vadd.xlane.f32.xlu0 %v821
  %v823 = vpop.xlane.xlu0 %822
  %v824 = vsel %vm22, %v811, 0.0
  %v825 = vadd.f32 %v810, %v824
  %826 = vadd.xlane.f32.xlu0 %v825
  %v827 = vpop.xlane.xlu0 %826
  %v828 = vmul.f32 %v815, 0.0051020407
  %v829 = vmul.f32 %v819, 0.0051020407
  %v830 = vmul.f32 %v823, 0.0051020407
  %v831 = vmul.f32 %v827, 0.0051020407
  %v832 = vsub.f32 %v804, %v828
  %v833 = vsub.f32 %v805, %v828
  %v834 = vsub.f32 %v806, %v829
  %v835 = vsub.f32 %v807, %v829
  %v836 = vsub.f32 %v808, %v830
  %v837 = vsub.f32 %v809, %v830
  %v838 = vsub.f32 %v810, %v831
  %v839 = vsub.f32 %v811, %v831
  %v840 = vmul.f32 %v832, %v832
  %v841 = vmul.f32 %v833, %v833
  %v842 = vmul.f32 %v834, %v834
  %v843 = vmul.f32 %v835, %v835
  %v844 = vmul.f32 %v836, %v836
  %v845 = vmul.f32 %v837, %v837
  %v846 = vmul.f32 %v838, %v838
  %v847 = vmul.f32 %v839, %v839
  %v848 = vsel %vm22, %v841, 0.0
  %v849 = vadd.f32 %v840, %v848
  %850 = vadd.xlane.f32.xlu0 %v849
  %v851 = vpop.xlane.xlu0 %850
  %v852 = vsel %vm22, %v843, 0.0
  %v853 = vadd.f32 %v842, %v852
  %854 = vadd.xlane.f32.xlu0 %v853
  %v855 = vpop.xlane.xlu0 %854
  %v856 = vsel %vm22, %v845, 0.0
  %v857 = vadd.f32 %v844, %v856
  %858 = vadd.xlane.f32.xlu0 %v857
  %v859 = vpop.xlane.xlu0 %858
  %v860 = vsel %vm22, %v847, 0.0
  %v861 = vadd.f32 %v846, %v860
  %862 = vadd.xlane.f32.xlu0 %v861
  %v863 = vpop.xlane.xlu0 %862
  %v864 = vmul.f32 %v851, 0.0051020407
  %v865 = vmul.f32 %v855, 0.0051020407
  %v866 = vmul.f32 %v859, 0.0051020407
  %v867 = vmul.f32 %v863, 0.0051020407
  %v868 = vadd.f32 %v864, 1e-05
  %v869 = vadd.f32 %v865, 1e-05
  %v870 = vadd.f32 %v866, 1e-05
  %v871 = vadd.f32 %v867, 1e-05
  %v872 = vrsqrt.pop %v868
  %v873 = vrsqrt.pop %v869
  %v874 = vrsqrt.pop %v870
  %v875 = vrsqrt.pop %v871
  %s876 = scalar_lea.vmem %s1, 160
  %v877 = vld [vmem:[%s876] sm:$0xff]
  %v878 = vld [vmem:[%s876 + $0x8] sm:$0xff]
  %v879 = vld [vmem:[%s876 + $0x10] sm:$0xff]
  %v880 = vld [vmem:[%s876 + $0x18] sm:$0xff]
  %v881 = vmul.f32 %v877, %v872
  %v882 = vmul.f32 %v878, %v873
  %v883 = vmul.f32 %v879, %v874
  %v884 = vmul.f32 %v880, %v875
  %886 = vset.pattern.permute.xlu0 0
  %887 = vperm.xlu0 %886, %v881
  %v888 = vpop.permute.xlu0 %887
  %891 = vset.pattern.permute.xlu0 0
  %892 = vperm.xlu0 %891, %v882
  %v893 = vpop.permute.xlu0 %892
  %896 = vset.pattern.permute.xlu0 0
  %897 = vperm.xlu0 %896, %v883
  %v898 = vpop.permute.xlu0 %897
  %901 = vset.pattern.permute.xlu0 0
  %902 = vperm.xlu0 %901, %v884
  %v903 = vpop.permute.xlu0 %902
  %v905 = vmul.f32 %v832, %v888
  %v906 = vmul.f32 %v833, %v888
  %v907 = vmul.f32 %v834, %v893
  %v908 = vmul.f32 %v835, %v893
  %v909 = vmul.f32 %v836, %v898
  %v910 = vmul.f32 %v837, %v898
  %v911 = vmul.f32 %v838, %v903
  %v912 = vmul.f32 %v839, %v903
  %914 = vset.pattern.permute.xlu0 1
  %915 = vperm.xlu0 %914, %v877
  %v916 = vpop.permute.xlu0 %915
  %919 = vset.pattern.permute.xlu0 1
  %920 = vperm.xlu0 %919, %v878
  %v921 = vpop.permute.xlu0 %920
  %924 = vset.pattern.permute.xlu0 1
  %925 = vperm.xlu0 %924, %v879
  %v926 = vpop.permute.xlu0 %925
  %929 = vset.pattern.permute.xlu0 1
  %930 = vperm.xlu0 %929, %v880
  %v931 = vpop.permute.xlu0 %930
  %v933 = vadd.f32 %v905, %v916
  %v934 = vadd.f32 %v906, %v916
  %v935 = vadd.f32 %v907, %v921
  %v936 = vadd.f32 %v908, %v921
  %v937 = vadd.f32 %v909, %v926
  %v938 = vadd.f32 %v910, %v926
  %v939 = vadd.f32 %v911, %v931
  %v940 = vadd.f32 %v912, %v931
  %v941 = vmax.f32 %v933, 0.0
  %v942 = vmax.f32 %v934, 0.0
  %v943 = vmax.f32 %v935, 0.0
  %v944 = vmax.f32 %v936, 0.0
  %v945 = vmax.f32 %v937, 0.0
  %v946 = vmax.f32 %v938, 0.0
  %v947 = vmax.f32 %v939, 0.0
  %v948 = vmax.f32 %v940, 0.0
  %s949 = smul.addr %s801, 8
  %s950 = scalar_lea.vmem %s2, %s949
  %951 = vst [vmem:[%s950] sm:$0xff] %v941
  %952 = vst.msk [vmem:[%s950 + $0x8] sm:$0xff] %vm22, %v942
  %953 = vst [vmem:[%s950 + $0x10] sm:$0xff] %v943
  %954 = vst.msk [vmem:[%s950 + $0x18] sm:$0xff] %vm22, %v944
  %955 = vst [vmem:[%s950 + $0x20] sm:$0xff] %v945
  %956 = vst.msk [vmem:[%s950 + $0x28] sm:$0xff] %vm22, %v946
  %957 = vst [vmem:[%s950 + $0x30] sm:$0xff] %v947
  %958 = vst.msk [vmem:[%s950 + $0x38] sm:$0xff] %vm22, %v948
  %s959 = smul.u32 24, 2
  %s960 = smul.addr %s959, 8
  %s961 = scalar_lea.vmem %s0, %s960
  %v962 = vld [vmem:[%s961] sm:$0xff]
  %v963 = vld [vmem:[%s961 + $0x8] sm:$0xff]
  %v964 = vld [vmem:[%s961 + $0x10] sm:$0xff]
  %v965 = vld [vmem:[%s961 + $0x18] sm:$0xff]
  %v966 = vld [vmem:[%s961 + $0x20] sm:$0xff]
  %v967 = vld [vmem:[%s961 + $0x28] sm:$0xff]
  %v968 = vld [vmem:[%s961 + $0x30] sm:$0xff]
  %v969 = vld [vmem:[%s961 + $0x38] sm:$0xff]
  %v970 = vsel %vm22, %v963, 0.0
  %v971 = vadd.f32 %v962, %v970
  %972 = vadd.xlane.f32.xlu0 %v971
  %v973 = vpop.xlane.xlu0 %972
  %v974 = vsel %vm22, %v965, 0.0
  %v975 = vadd.f32 %v964, %v974
  %976 = vadd.xlane.f32.xlu0 %v975
  %v977 = vpop.xlane.xlu0 %976
  %v978 = vsel %vm22, %v967, 0.0
  %v979 = vadd.f32 %v966, %v978
  %980 = vadd.xlane.f32.xlu0 %v979
  %v981 = vpop.xlane.xlu0 %980
  %v982 = vsel %vm22, %v969, 0.0
  %v983 = vadd.f32 %v968, %v982
  %984 = vadd.xlane.f32.xlu0 %v983
  %v985 = vpop.xlane.xlu0 %984
  %v986 = vmul.f32 %v973, 0.0051020407
  %v987 = vmul.f32 %v977, 0.0051020407
  %v988 = vmul.f32 %v981, 0.0051020407
  %v989 = vmul.f32 %v985, 0.0051020407
  %v990 = vsub.f32 %v962, %v986
  %v991 = vsub.f32 %v963, %v986
  %v992 = vsub.f32 %v964, %v987
  %v993 = vsub.f32 %v965, %v987
  %v994 = vsub.f32 %v966, %v988
  %v995 = vsub.f32 %v967, %v988
  %v996 = vsub.f32 %v968, %v989
  %v997 = vsub.f32 %v969, %v989
  %v998 = vmul.f32 %v990, %v990
  %v999 = vmul.f32 %v991, %v991
  %v1000 = vmul.f32 %v992, %v992
  %v1001 = vmul.f32 %v993, %v993
  %v1002 = vmul.f32 %v994, %v994
  %v1003 = vmul.f32 %v995, %v995
  %v1004 = vmul.f32 %v996, %v996
  %v1005 = vmul.f32 %v997, %v997
  %v1006 = vsel %vm22, %v999, 0.0
  %v1007 = vadd.f32 %v998, %v1006
  %1008 = vadd.xlane.f32.xlu0 %v1007
  %v1009 = vpop.xlane.xlu0 %1008
  %v1010 = vsel %vm22, %v1001, 0.0
  %v1011 = vadd.f32 %v1000, %v1010
  %1012 = vadd.xlane.f32.xlu0 %v1011
  %v1013 = vpop.xlane.xlu0 %1012
  %v1014 = vsel %vm22, %v1003, 0.0
  %v1015 = vadd.f32 %v1002, %v1014
  %1016 = vadd.xlane.f32.xlu0 %v1015
  %v1017 = vpop.xlane.xlu0 %1016
  %v1018 = vsel %vm22, %v1005, 0.0
  %v1019 = vadd.f32 %v1004, %v1018
  %1020 = vadd.xlane.f32.xlu0 %v1019
  %v1021 = vpop.xlane.xlu0 %1020
  %v1022 = vmul.f32 %v1009, 0.0051020407
  %v1023 = vmul.f32 %v1013, 0.0051020407
  %v1024 = vmul.f32 %v1017, 0.0051020407
  %v1025 = vmul.f32 %v1021, 0.0051020407
  %v1026 = vadd.f32 %v1022, 1e-05
  %v1027 = vadd.f32 %v1023, 1e-05
  %v1028 = vadd.f32 %v1024, 1e-05
  %v1029 = vadd.f32 %v1025, 1e-05
  %v1030 = vrsqrt.pop %v1026
  %v1031 = vrsqrt.pop %v1027
  %v1032 = vrsqrt.pop %v1028
  %v1033 = vrsqrt.pop %v1029
  %s1034 = scalar_lea.vmem %s1, 192
  %v1035 = vld [vmem:[%s1034] sm:$0xff]
  %v1036 = vld [vmem:[%s1034 + $0x8] sm:$0xff]
  %v1037 = vld [vmem:[%s1034 + $0x10] sm:$0xff]
  %v1038 = vld [vmem:[%s1034 + $0x18] sm:$0xff]
  %v1039 = vmul.f32 %v1035, %v1030
  %v1040 = vmul.f32 %v1036, %v1031
  %v1041 = vmul.f32 %v1037, %v1032
  %v1042 = vmul.f32 %v1038, %v1033
  %1044 = vset.pattern.permute.xlu0 0
  %1045 = vperm.xlu0 %1044, %v1039
  %v1046 = vpop.permute.xlu0 %1045
  %1049 = vset.pattern.permute.xlu0 0
  %1050 = vperm.xlu0 %1049, %v1040
  %v1051 = vpop.permute.xlu0 %1050
  %1054 = vset.pattern.permute.xlu0 0
  %1055 = vperm.xlu0 %1054, %v1041
  %v1056 = vpop.permute.xlu0 %1055
  %1059 = vset.pattern.permute.xlu0 0
  %1060 = vperm.xlu0 %1059, %v1042
  %v1061 = vpop.permute.xlu0 %1060
  %v1063 = vmul.f32 %v990, %v1046
  %v1064 = vmul.f32 %v991, %v1046
  %v1065 = vmul.f32 %v992, %v1051
  %v1066 = vmul.f32 %v993, %v1051
  %v1067 = vmul.f32 %v994, %v1056
  %v1068 = vmul.f32 %v995, %v1056
  %v1069 = vmul.f32 %v996, %v1061
  %v1070 = vmul.f32 %v997, %v1061
  %1072 = vset.pattern.permute.xlu0 1
  %1073 = vperm.xlu0 %1072, %v1035
  %v1074 = vpop.permute.xlu0 %1073
  %1077 = vset.pattern.permute.xlu0 1
  %1078 = vperm.xlu0 %1077, %v1036
  %v1079 = vpop.permute.xlu0 %1078
  %1082 = vset.pattern.permute.xlu0 1
  %1083 = vperm.xlu0 %1082, %v1037
  %v1084 = vpop.permute.xlu0 %1083
  %1087 = vset.pattern.permute.xlu0 1
  %1088 = vperm.xlu0 %1087, %v1038
  %v1089 = vpop.permute.xlu0 %1088
  %v1091 = vadd.f32 %v1063, %v1074
  %v1092 = vadd.f32 %v1064, %v1074
  %v1093 = vadd.f32 %v1065, %v1079
  %v1094 = vadd.f32 %v1066, %v1079
  %v1095 = vadd.f32 %v1067, %v1084
  %v1096 = vadd.f32 %v1068, %v1084
  %v1097 = vadd.f32 %v1069, %v1089
  %v1098 = vadd.f32 %v1070, %v1089
  %v1099 = vmax.f32 %v1091, 0.0
  %v1100 = vmax.f32 %v1092, 0.0
  %v1101 = vmax.f32 %v1093, 0.0
  %v1102 = vmax.f32 %v1094, 0.0
  %v1103 = vmax.f32 %v1095, 0.0
  %v1104 = vmax.f32 %v1096, 0.0
  %v1105 = vmax.f32 %v1097, 0.0
  %v1106 = vmax.f32 %v1098, 0.0
  %s1107 = smul.addr %s959, 8
  %s1108 = scalar_lea.vmem %s2, %s1107
  %1109 = vst [vmem:[%s1108] sm:$0xff] %v1099
  %1110 = vst.msk [vmem:[%s1108 + $0x8] sm:$0xff] %vm22, %v1100
  %1111 = vst [vmem:[%s1108 + $0x10] sm:$0xff] %v1101
  %1112 = vst.msk [vmem:[%s1108 + $0x18] sm:$0xff] %vm22, %v1102
  %1113 = vst [vmem:[%s1108 + $0x20] sm:$0xff] %v1103
  %1114 = vst.msk [vmem:[%s1108 + $0x28] sm:$0xff] %vm22, %v1104
  %1115 = vst [vmem:[%s1108 + $0x30] sm:$0xff] %v1105
  %1116 = vst.msk [vmem:[%s1108 + $0x38] sm:$0xff] %vm22, %v1106
  %s1117 = smul.u32 28, 2
  %s1118 = smul.addr %s1117, 8
  %s1119 = scalar_lea.vmem %s0, %s1118
  %v1120 = vld [vmem:[%s1119] sm:$0xff]
  %v1121 = vld [vmem:[%s1119 + $0x8] sm:$0xff]
  %v1122 = vld [vmem:[%s1119 + $0x10] sm:$0xff]
  %v1123 = vld [vmem:[%s1119 + $0x18] sm:$0xff]
  %v1124 = vld [vmem:[%s1119 + $0x20] sm:$0xff]
  %v1125 = vld [vmem:[%s1119 + $0x28] sm:$0xff]
  %v1126 = vld [vmem:[%s1119 + $0x30] sm:$0xff]
  %v1127 = vld [vmem:[%s1119 + $0x38] sm:$0xff]
  %v1128 = vsel %vm22, %v1121, 0.0
  %v1129 = vadd.f32 %v1120, %v1128
  %1130 = vadd.xlane.f32.xlu0 %v1129
  %v1131 = vpop.xlane.xlu0 %1130
  %v1132 = vsel %vm22, %v1123, 0.0
  %v1133 = vadd.f32 %v1122, %v1132
  %1134 = vadd.xlane.f32.xlu0 %v1133
  %v1135 = vpop.xlane.xlu0 %1134
  %v1136 = vsel %vm22, %v1125, 0.0
  %v1137 = vadd.f32 %v1124, %v1136
  %1138 = vadd.xlane.f32.xlu0 %v1137
  %v1139 = vpop.xlane.xlu0 %1138
  %v1140 = vsel %vm22, %v1127, 0.0
  %v1141 = vadd.f32 %v1126, %v1140
  %1142 = vadd.xlane.f32.xlu0 %v1141
  %v1143 = vpop.xlane.xlu0 %1142
  %v1144 = vmul.f32 %v1131, 0.0051020407
  %v1145 = vmul.f32 %v1135, 0.0051020407
  %v1146 = vmul.f32 %v1139, 0.0051020407
  %v1147 = vmul.f32 %v1143, 0.0051020407
  %v1148 = vsub.f32 %v1120, %v1144
  %v1149 = vsub.f32 %v1121, %v1144
  %v1150 = vsub.f32 %v1122, %v1145
  %v1151 = vsub.f32 %v1123, %v1145
  %v1152 = vsub.f32 %v1124, %v1146
  %v1153 = vsub.f32 %v1125, %v1146
  %v1154 = vsub.f32 %v1126, %v1147
  %v1155 = vsub.f32 %v1127, %v1147
  %v1156 = vmul.f32 %v1148, %v1148
  %v1157 = vmul.f32 %v1149, %v1149
  %v1158 = vmul.f32 %v1150, %v1150
  %v1159 = vmul.f32 %v1151, %v1151
  %v1160 = vmul.f32 %v1152, %v1152
  %v1161 = vmul.f32 %v1153, %v1153
  %v1162 = vmul.f32 %v1154, %v1154
  %v1163 = vmul.f32 %v1155, %v1155
  %v1164 = vsel %vm22, %v1157, 0.0
  %v1165 = vadd.f32 %v1156, %v1164
  %1166 = vadd.xlane.f32.xlu0 %v1165
  %v1167 = vpop.xlane.xlu0 %1166
  %v1168 = vsel %vm22, %v1159, 0.0
  %v1169 = vadd.f32 %v1158, %v1168
  %1170 = vadd.xlane.f32.xlu0 %v1169
  %v1171 = vpop.xlane.xlu0 %1170
  %v1172 = vsel %vm22, %v1161, 0.0
  %v1173 = vadd.f32 %v1160, %v1172
  %1174 = vadd.xlane.f32.xlu0 %v1173
  %v1175 = vpop.xlane.xlu0 %1174
  %v1176 = vsel %vm22, %v1163, 0.0
  %v1177 = vadd.f32 %v1162, %v1176
  %1178 = vadd.xlane.f32.xlu0 %v1177
  %v1179 = vpop.xlane.xlu0 %1178
  %v1180 = vmul.f32 %v1167, 0.0051020407
  %v1181 = vmul.f32 %v1171, 0.0051020407
  %v1182 = vmul.f32 %v1175, 0.0051020407
  %v1183 = vmul.f32 %v1179, 0.0051020407
  %v1184 = vadd.f32 %v1180, 1e-05
  %v1185 = vadd.f32 %v1181, 1e-05
  %v1186 = vadd.f32 %v1182, 1e-05
  %v1187 = vadd.f32 %v1183, 1e-05
  %v1188 = vrsqrt.pop %v1184
  %v1189 = vrsqrt.pop %v1185
  %v1190 = vrsqrt.pop %v1186
  %v1191 = vrsqrt.pop %v1187
  %s1192 = scalar_lea.vmem %s1, 224
  %v1193 = vld [vmem:[%s1192] sm:$0xff]
  %v1194 = vld [vmem:[%s1192 + $0x8] sm:$0xff]
  %v1195 = vld [vmem:[%s1192 + $0x10] sm:$0xff]
  %v1196 = vld [vmem:[%s1192 + $0x18] sm:$0xff]
  %v1197 = vmul.f32 %v1193, %v1188
  %v1198 = vmul.f32 %v1194, %v1189
  %v1199 = vmul.f32 %v1195, %v1190
  %v1200 = vmul.f32 %v1196, %v1191
  %1202 = vset.pattern.permute.xlu0 0
  %1203 = vperm.xlu0 %1202, %v1197
  %v1204 = vpop.permute.xlu0 %1203
  %1207 = vset.pattern.permute.xlu0 0
  %1208 = vperm.xlu0 %1207, %v1198
  %v1209 = vpop.permute.xlu0 %1208
  %1212 = vset.pattern.permute.xlu0 0
  %1213 = vperm.xlu0 %1212, %v1199
  %v1214 = vpop.permute.xlu0 %1213
  %1217 = vset.pattern.permute.xlu0 0
  %1218 = vperm.xlu0 %1217, %v1200
  %v1219 = vpop.permute.xlu0 %1218
  %v1221 = vmul.f32 %v1148, %v1204
  %v1222 = vmul.f32 %v1149, %v1204
  %v1223 = vmul.f32 %v1150, %v1209
  %v1224 = vmul.f32 %v1151, %v1209
  %v1225 = vmul.f32 %v1152, %v1214
  %v1226 = vmul.f32 %v1153, %v1214
  %v1227 = vmul.f32 %v1154, %v1219
  %v1228 = vmul.f32 %v1155, %v1219
  %1230 = vset.pattern.permute.xlu0 1
  %1231 = vperm.xlu0 %1230, %v1193
  %v1232 = vpop.permute.xlu0 %1231
  %1235 = vset.pattern.permute.xlu0 1
  %1236 = vperm.xlu0 %1235, %v1194
  %v1237 = vpop.permute.xlu0 %1236
  %1240 = vset.pattern.permute.xlu0 1
  %1241 = vperm.xlu0 %1240, %v1195
  %v1242 = vpop.permute.xlu0 %1241
  %1245 = vset.pattern.permute.xlu0 1
  %1246 = vperm.xlu0 %1245, %v1196
  %v1247 = vpop.permute.xlu0 %1246
  %v1249 = vadd.f32 %v1221, %v1232
  %v1250 = vadd.f32 %v1222, %v1232
  %v1251 = vadd.f32 %v1223, %v1237
  %v1252 = vadd.f32 %v1224, %v1237
  %v1253 = vadd.f32 %v1225, %v1242
  %v1254 = vadd.f32 %v1226, %v1242
  %v1255 = vadd.f32 %v1227, %v1247
  %v1256 = vadd.f32 %v1228, %v1247
  %v1257 = vmax.f32 %v1249, 0.0
  %v1258 = vmax.f32 %v1250, 0.0
  %v1259 = vmax.f32 %v1251, 0.0
  %v1260 = vmax.f32 %v1252, 0.0
  %v1261 = vmax.f32 %v1253, 0.0
  %v1262 = vmax.f32 %v1254, 0.0
  %v1263 = vmax.f32 %v1255, 0.0
  %v1264 = vmax.f32 %v1256, 0.0
  %s1265 = smul.addr %s1117, 8
  %s1266 = scalar_lea.vmem %s2, %s1265
  %1267 = vst [vmem:[%s1266] sm:$0xff] %v1257
  %1268 = vst.msk [vmem:[%s1266 + $0x8] sm:$0xff] %vm22, %v1258
  %1269 = vst [vmem:[%s1266 + $0x10] sm:$0xff] %v1259
  %1270 = vst.msk [vmem:[%s1266 + $0x18] sm:$0xff] %vm22, %v1260
  %1271 = vst [vmem:[%s1266 + $0x20] sm:$0xff] %v1261
  %1272 = vst.msk [vmem:[%s1266 + $0x28] sm:$0xff] %vm22, %v1262
  %1273 = vst [vmem:[%s1266 + $0x30] sm:$0xff] %v1263
  %1274 = vst.msk [vmem:[%s1266 + $0x38] sm:$0xff] %vm22, %v1264
  // Predicated region
  $region10: #{tpu_custom_call.1} parent=0 // pred_check
    _
  $region11: #{tpu_custom_call.1} parent=0 // pred_check_branch
    %1276 = sbr.rel (0) target = $region13
  $region12: #{tpu_custom_call.1} parent=0 // pred_region
    _
  $region13: #{tpu_custom_call.1} parent=0 // pred_fallthru
    _
  // Predicated region
  $region14: #{tpu_custom_call.1} parent=0 // pred_check
    _
  $region15: #{tpu_custom_call.1} parent=0 // pred_check_branch
    %1278 = sbr.rel (0) target = $region17
  $region16: #{tpu_custom_call.1} parent=0 // pred_region
    _
  $region17: #{tpu_custom_call.1} parent=0 // pred_fallthru
    _

</llo_original>
